<compile_context>
chip_gen: v7x
topology: tpu7x:2x2x1
jax: 0.10.0
libtpu: 0.0.40
codegen_flags: <defaults>
</compile_context>

<pallas_src>
import functools

import jax
import jax.numpy as jnp
from jax.experimental import pallas as pl
from jax.experimental.pallas import tpu as pltpu


def _lstm_cell(gates, c_prev, H):
    # One full-width sigmoid + one full-width tanh over (Bp, 4H), then static slices.
    # PyTorch gate order: i, f, g, o.
    sg = jax.nn.sigmoid(gates)
    th = jnp.tanh(gates)
    i_g = sg[:, 0 * H:1 * H]
    f_g = sg[:, 1 * H:2 * H]
    g_g = th[:, 2 * H:3 * H]
    o_g = sg[:, 3 * H:4 * H]
    c_new = f_g * c_prev + i_g * g_g
    h_new = o_g * jnp.tanh(c_new)
    return h_new, c_new


def _lstm_kernel(T, Bp, H,
                 x_ref, wih1_ref, whh1_ref, b1_ref,
                 wih2_ref, whh2_ref, b2_ref,
                 wfc_ref, bfc_ref,
                 out_ref,
                 gx_ref, h1_ref):
    f32 = jnp.float32

    # ---- Layer 1: hoisted input projection (one big MXU matmul, bias folded in) ----
    gx_ref[...] = (jnp.dot(x_ref[...], wih1_ref[...], preferred_element_type=f32)
                   + b1_ref[...])

    whh1 = whh1_ref[...]
    h = jnp.zeros((Bp, H), f32)
    c = jnp.zeros((Bp, H), f32)
    # Recurrence: T is small & static -> fully unrolled, all slice offsets static.
    # TODO(synk): for long sequences, chunk T (or switch to lax.fori_loop) and re-check
    # the (T*Bp, 4H) scratch against v7x's smaller VMEM.
    for t in range(T):
        gates = (gx_ref[t * Bp:(t + 1) * Bp, :]
                 + jnp.dot(h, whh1, preferred_element_type=f32))
        h, c = _lstm_cell(gates, c, H)
        h1_ref[t * Bp:(t + 1) * Bp, :] = h

    # ---- Layer 2: hoisted input projection over the whole layer-1 sequence ----
    gx_ref[...] = (jnp.dot(h1_ref[...], wih2_ref[...], preferred_element_type=f32)
                   + b2_ref[...])

    whh2 = whh2_ref[...]
    h = jnp.zeros((Bp, H), f32)
    c = jnp.zeros((Bp, H), f32)
    for t in range(T):
        gates = (gx_ref[t * Bp:(t + 1) * Bp, :]
                 + jnp.dot(h, whh2, preferred_element_type=f32))
        h, c = _lstm_cell(gates, c, H)

    # ---- Final Linear on the last timestep's layer-2 hidden state ----
    out_ref[...] = (jnp.dot(h, wfc_ref[...], preferred_element_type=f32)
                    + bfc_ref[...]).astype(out_ref.dtype)


def lstm_pallas(x, params):
    """x: (B, T, I) float32 (batch_first, like PyTorch).  Returns (B, num_classes)."""
    B, T, I = x.shape
    wih1, whh1, b1, wih2, whh2, b2, wfc, bfc = params
    H = whh1.shape[0]
    C = wfc.shape[1]

    # Pad batch to a sublane multiple (>= 8): aligned tiles, denser MXU/VPU rows.
    Bp = max(8, ((B + 7) // 8) * 8)
    if Bp != B:
        x = jnp.pad(x, ((0, Bp - B), (0, 0), (0, 0)))

    # Time-major, flattened to (T*Bp, I) so the layer-1 input projection is ONE matmul.
    x_tm = jnp.transpose(x, (1, 0, 2)).reshape(T * Bp, I)

    kernel = functools.partial(_lstm_kernel, T, Bp, H)
    const = lambda shape: pl.BlockSpec(shape, lambda i: tuple(0 for _ in shape))

    out = pl.pallas_call(
        kernel,
        out_shape=jax.ShapeDtypeStruct((Bp, C), jnp.float32),
        grid_spec=pltpu.PrefetchScalarGridSpec(
            num_scalar_prefetch=0,
            grid=(1,),  # single invocation: no per-timestep pipeline overhead
            in_specs=[
                const((T * Bp, I)),      # x, time-major & flattened
                const((I, 4 * H)),       # W_ih layer1 (transposed, (in, out))
                const((H, 4 * H)),       # W_hh layer1
                const((1, 4 * H)),       # b_ih + b_hh layer1
                const((H, 4 * H)),       # W_ih layer2
                const((H, 4 * H)),       # W_hh layer2
                const((1, 4 * H)),       # bias layer2
                const((H, C)),           # W_fc (transposed)
                const((1, C)),           # b_fc
            ],
            out_specs=const((Bp, C)),
            scratch_shapes=[
                pltpu.VMEM((T * Bp, 4 * H), jnp.float32),  # hoisted input projections
                pltpu.VMEM((T * Bp, H), jnp.float32),      # layer-1 hidden sequence
            ],
        ),
        compiler_params=pltpu.CompilerParams(
            dimension_semantics=("arbitrary",)),
    )(x_tm, wih1, whh1, b1, wih2, whh2, b2, wfc, bfc)
    return out[:B]


def init_params(key, input_size, hidden_size, num_classes):
    """Deterministic init mirroring PyTorch's U(-1/sqrt(H), 1/sqrt(H)) LSTM/Linear init.
    Weights stored pre-transposed to (in, out) for the kernel's x @ W layout."""
    H = hidden_size
    k = 1.0 / jnp.sqrt(jnp.float32(H))
    keys = jax.random.split(key, 12)
    u = lambda kk, shape: jax.random.uniform(kk, shape, jnp.float32, -k, k)

    wih1 = u(keys[0], (input_size, 4 * H))
    whh1 = u(keys[1], (H, 4 * H))
    b1 = u(keys[2], (1, 4 * H)) + u(keys[3], (1, 4 * H))      # b_ih + b_hh
    wih2 = u(keys[4], (H, 4 * H))
    whh2 = u(keys[5], (H, 4 * H))
    b2 = u(keys[6], (1, 4 * H)) + u(keys[7], (1, 4 * H))
    wfc = u(keys[8], (H, num_classes))
    bfc = u(keys[9], (1, num_classes))
    return (wih1, whh1, b1, wih2, whh2, b2, wfc, bfc)


def lstm_reference(x, params):
    """Pure-JAX reference (lax.scan) matching PyTorch LSTM semantics."""
    wih1, whh1, b1, wih2, whh2, b2, wfc, bfc = params
    B = x.shape[0]
    H = whh1.shape[0]

    def cell(carry, x_t, wih, whh, b):
        h, c = carry
        gates = x_t @ wih + h @ whh + b
        i = jax.nn.sigmoid(gates[:, 0 * H:1 * H])
        f = jax.nn.sigmoid(gates[:, 1 * H:2 * H])
        g = jnp.tanh(gates[:, 2 * H:3 * H])
        o = jax.nn.sigmoid(gates[:, 3 * H:4 * H])
        c_new = f * c + i * g
        h_new = o * jnp.tanh(c_new)
        return (h_new, c_new), h_new

    x_tm = jnp.transpose(x, (1, 0, 2))
    init = (jnp.zeros((B, H), jnp.float32), jnp.zeros((B, H), jnp.float32))
    _, out1 = jax.lax.scan(lambda cr, xt: cell(cr, xt, wih1, whh1, b1), init, x_tm)
    _, out2 = jax.lax.scan(lambda cr, xt: cell(cr, xt, wih2, whh2, b2), init, out1)
    return out2[-1] @ wfc + bfc


if __name__ == "__main__":
    B, T, I, H, C = 2, 8, 16, 32, 8  # batch, seq, input_size, hidden_size, num_classes

    key = jax.random.PRNGKey(0)
    kx, kp = jax.random.split(key)
    x = jax.random.normal(kx, (B, T, I), dtype=jnp.float32)
    params = init_params(kp, I, H, C)

    out = jax.block_until_ready(lstm_pallas(x, params))
    ref = jax.block_until_ready(lstm_reference(x, params))

    assert out.shape == (B, C)
    assert jnp.allclose(out, ref, atol=1e-5, rtol=1e-5), "mismatch vs reference"
    print("KERNEL_OK")
</pallas_src>

<mosaic_0001>
module attributes {stable_mosaic.version = 11 : i64} {
  func.func @_lstm_kernel(%arg0: i32, %arg1: memref<64x16xf32, #tpu.memory_space<vmem>>, %arg2: memref<16x128xf32, #tpu.memory_space<vmem>>, %arg3: memref<32x128xf32, #tpu.memory_space<vmem>>, %arg4: memref<1x128xf32, #tpu.memory_space<vmem>>, %arg5: memref<32x128xf32, #tpu.memory_space<vmem>>, %arg6: memref<32x128xf32, #tpu.memory_space<vmem>>, %arg7: memref<1x128xf32, #tpu.memory_space<vmem>>, %arg8: memref<32x8xf32, #tpu.memory_space<vmem>>, %arg9: memref<1x8xf32, #tpu.memory_space<vmem>>, %arg10: memref<8x8xf32, #tpu.memory_space<vmem>>, %arg11: memref<64x128xf32, #tpu.memory_space<vmem>>, %arg12: memref<64x32xf32, #tpu.memory_space<vmem>>) attributes {dimension_semantics = [#tpu.dimension_semantics<arbitrary>], iteration_bounds = array<i64: 1>, scalar_prefetch = 0 : i64, scratch_operands = 2 : i64, tpu.core_type = #tpu.core_type<tc>, window_params = [{pipeline_mode = #tpu.pipeline_mode<synchronous>, transform_indices = @transform_0, window_bounds = array<i64: 64, 16>}, {pipeline_mode = #tpu.pipeline_mode<synchronous>, transform_indices = @transform_1, window_bounds = array<i64: 16, 128>}, {pipeline_mode = #tpu.pipeline_mode<synchronous>, transform_indices = @transform_2, window_bounds = array<i64: 32, 128>}, {pipeline_mode = #tpu.pipeline_mode<synchronous>, transform_indices = @transform_3, window_bounds = array<i64: 1, 128>}, {pipeline_mode = #tpu.pipeline_mode<synchronous>, transform_indices = @transform_4, window_bounds = array<i64: 32, 128>}, {pipeline_mode = #tpu.pipeline_mode<synchronous>, transform_indices = @transform_5, window_bounds = array<i64: 32, 128>}, {pipeline_mode = #tpu.pipeline_mode<synchronous>, transform_indices = @transform_6, window_bounds = array<i64: 1, 128>}, {pipeline_mode = #tpu.pipeline_mode<synchronous>, transform_indices = @transform_7, window_bounds = array<i64: 32, 8>}, {pipeline_mode = #tpu.pipeline_mode<synchronous>, transform_indices = @transform_8, window_bounds = array<i64: 1, 8>}, {pipeline_mode = #tpu.pipeline_mode<synchronous>, transform_indices = @transform_9, window_bounds = array<i64: 8, 8>}]} {
    %c0 = arith.constant 0 : index
    %c0_0 = arith.constant 0 : index
    %0 = vector.load %arg1[%c0, %c0_0] : memref<64x16xf32, #tpu.memory_space<vmem>>, vector<64x16xf32>
    %c0_1 = arith.constant 0 : index
    %c0_2 = arith.constant 0 : index
    %1 = vector.load %arg2[%c0_1, %c0_2] : memref<16x128xf32, #tpu.memory_space<vmem>>, vector<16x128xf32>
    %cst = arith.constant dense<0.000000e+00> : vector<64x128xf32>
    %2 = tpu.matmul %0, %1, %cst {dimension_numbers = #tpu.dot_dimension_numbers<[1], [0], [0], [1], [0, 0, 1, 1], [], []>} : vector<64x16xf32>, vector<16x128xf32>, vector<64x128xf32> -> vector<64x128xf32>
    %c0_3 = arith.constant 0 : index
    %c0_4 = arith.constant 0 : index
    %3 = vector.load %arg4[%c0_3, %c0_4] : memref<1x128xf32, #tpu.memory_space<vmem>>, vector<1x128xf32>
    %4 = vector.broadcast %3 : vector<1x128xf32> to vector<64x128xf32>
    %5 = arith.addf %2, %4 : vector<64x128xf32>
    %c0_5 = arith.constant 0 : index
    %c0_6 = arith.constant 0 : index
    %6 = vector.load %arg11[%c0_5, %c0_6] : memref<64x128xf32, #tpu.memory_space<vmem>>, vector<64x128xf32>
    tpu.vector_store %arg11[%c0_5, %c0_6], %5 {strides = array<i32>} : memref<64x128xf32, #tpu.memory_space<vmem>>, vector<64x128xf32>,
    %c0_7 = arith.constant 0 : index
    %c0_8 = arith.constant 0 : index
    %7 = vector.load %arg3[%c0_7, %c0_8] : memref<32x128xf32, #tpu.memory_space<vmem>>, vector<32x128xf32>
    %cst_9 = arith.constant 0.000000e+00 : f32
    %8 = vector.broadcast %cst_9 : f32 to vector<8x32xf32>
    %cst_10 = arith.constant 0.000000e+00 : f32
    %9 = vector.broadcast %cst_10 : f32 to vector<8x32xf32>
    %c0_11 = arith.constant 0 : index
    %c0_12 = arith.constant 0 : index
    %10 = vector.load %arg11[%c0_11, %c0_12] : memref<64x128xf32, #tpu.memory_space<vmem>>, vector<8x128xf32>
    %cst_13 = arith.constant dense<0.000000e+00> : vector<8x128xf32>
    %11 = tpu.matmul %8, %7, %cst_13 {dimension_numbers = #tpu.dot_dimension_numbers<[1], [0], [0], [1], [0, 0, 1, 1], [], []>} : vector<8x32xf32>, vector<32x128xf32>, vector<8x128xf32> -> vector<8x128xf32>
    %12 = arith.addf %10, %11 : vector<8x128xf32>
    %13 = arith.negf %12 : vector<8x128xf32>
    %14 = math.exp %13 : vector<8x128xf32>
    %cst_14 = arith.constant 1.000000e+00 : f32
    %15 = vector.broadcast %cst_14 : f32 to vector<8x128xf32>
    %16 = arith.addf %15, %14 : vector<8x128xf32>
    %17 = arith.divf %15, %16 : vector<8x128xf32>
    %18 = math.tanh %12 : vector<8x128xf32>
    %19 = vector.extract_strided_slice %17 {offsets = [0, 0], sizes = [8, 32], strides = [1, 1]} : vector<8x128xf32> to vector<8x32xf32>
    %20 = vector.extract_strided_slice %17 {offsets = [0, 32], sizes = [8, 32], strides = [1, 1]} : vector<8x128xf32> to vector<8x32xf32>
    %21 = vector.extract_strided_slice %18 {offsets = [0, 64], sizes = [8, 32], strides = [1, 1]} : vector<8x128xf32> to vector<8x32xf32>
    %22 = vector.extract_strided_slice %17 {offsets = [0, 96], sizes = [8, 32], strides = [1, 1]} : vector<8x128xf32> to vector<8x32xf32>
    %23 = arith.mulf %20, %9 : vector<8x32xf32>
    %24 = arith.mulf %19, %21 : vector<8x32xf32>
    %25 = arith.addf %23, %24 : vector<8x32xf32>
    %26 = math.tanh %25 : vector<8x32xf32>
    %27 = arith.mulf %22, %26 : vector<8x32xf32>
    %c0_15 = arith.constant 0 : index
    %c0_16 = arith.constant 0 : index
    %28 = vector.load %arg12[%c0_15, %c0_16] : memref<64x32xf32, #tpu.memory_space<vmem>>, vector<8x32xf32>
    tpu.vector_store %arg12[%c0_15, %c0_16], %27 {strides = array<i32>} : memref<64x32xf32, #tpu.memory_space<vmem>>, vector<8x32xf32>,
    %c8 = arith.constant 8 : index
    %c0_17 = arith.constant 0 : index
    %29 = vector.load %arg11[%c8, %c0_17] : memref<64x128xf32, #tpu.memory_space<vmem>>, vector<8x128xf32>
    %cst_18 = arith.constant dense<0.000000e+00> : vector<8x128xf32>
    %30 = tpu.matmul %27, %7, %cst_18 {dimension_numbers = #tpu.dot_dimension_numbers<[1], [0], [0], [1], [0, 0, 1, 1], [], []>} : vector<8x32xf32>, vector<32x128xf32>, vector<8x128xf32> -> vector<8x128xf32>
    %31 = arith.addf %29, %30 : vector<8x128xf32>
    %32 = arith.negf %31 : vector<8x128xf32>
    %33 = math.exp %32 : vector<8x128xf32>
    %cst_19 = arith.constant 1.000000e+00 : f32
    %34 = vector.broadcast %cst_19 : f32 to vector<8x128xf32>
    %35 = arith.addf %34, %33 : vector<8x128xf32>
    %36 = arith.divf %34, %35 : vector<8x128xf32>
    %37 = math.tanh %31 : vector<8x128xf32>
    %38 = vector.extract_strided_slice %36 {offsets = [0, 0], sizes = [8, 32], strides = [1, 1]} : vector<8x128xf32> to vector<8x32xf32>
    %39 = vector.extract_strided_slice %36 {offsets = [0, 32], sizes = [8, 32], strides = [1, 1]} : vector<8x128xf32> to vector<8x32xf32>
    %40 = vector.extract_strided_slice %37 {offsets = [0, 64], sizes = [8, 32], strides = [1, 1]} : vector<8x128xf32> to vector<8x32xf32>
    %41 = vector.extract_strided_slice %36 {offsets = [0, 96], sizes = [8, 32], strides = [1, 1]} : vector<8x128xf32> to vector<8x32xf32>
    %42 = arith.mulf %39, %25 : vector<8x32xf32>
    %43 = arith.mulf %38, %40 : vector<8x32xf32>
    %44 = arith.addf %42, %43 : vector<8x32xf32>
    %45 = math.tanh %44 : vector<8x32xf32>
    %46 = arith.mulf %41, %45 : vector<8x32xf32>
    %c8_20 = arith.constant 8 : index
    %c0_21 = arith.constant 0 : index
    %47 = vector.load %arg12[%c8_20, %c0_21] : memref<64x32xf32, #tpu.memory_space<vmem>>, vector<8x32xf32>
    tpu.vector_store %arg12[%c8_20, %c0_21], %46 {strides = array<i32>} : memref<64x32xf32, #tpu.memory_space<vmem>>, vector<8x32xf32>,
    %c16 = arith.constant 16 : index
    %c0_22 = arith.constant 0 : index
    %48 = vector.load %arg11[%c16, %c0_22] : memref<64x128xf32, #tpu.memory_space<vmem>>, vector<8x128xf32>
    %cst_23 = arith.constant dense<0.000000e+00> : vector<8x128xf32>
    %49 = tpu.matmul %46, %7, %cst_23 {dimension_numbers = #tpu.dot_dimension_numbers<[1], [0], [0], [1], [0, 0, 1, 1], [], []>} : vector<8x32xf32>, vector<32x128xf32>, vector<8x128xf32> -> vector<8x128xf32>
    %50 = arith.addf %48, %49 : vector<8x128xf32>
    %51 = arith.negf %50 : vector<8x128xf32>
    %52 = math.exp %51 : vector<8x128xf32>
    %cst_24 = arith.constant 1.000000e+00 : f32
    %53 = vector.broadcast %cst_24 : f32 to vector<8x128xf32>
    %54 = arith.addf %53, %52 : vector<8x128xf32>
    %55 = arith.divf %53, %54 : vector<8x128xf32>
    %56 = math.tanh %50 : vector<8x128xf32>
    %57 = vector.extract_strided_slice %55 {offsets = [0, 0], sizes = [8, 32], strides = [1, 1]} : vector<8x128xf32> to vector<8x32xf32>
    %58 = vector.extract_strided_slice %55 {offsets = [0, 32], sizes = [8, 32], strides = [1, 1]} : vector<8x128xf32> to vector<8x32xf32>
    %59 = vector.extract_strided_slice %56 {offsets = [0, 64], sizes = [8, 32], strides = [1, 1]} : vector<8x128xf32> to vector<8x32xf32>
    %60 = vector.extract_strided_slice %55 {offsets = [0, 96], sizes = [8, 32], strides = [1, 1]} : vector<8x128xf32> to vector<8x32xf32>
    %61 = arith.mulf %58, %44 : vector<8x32xf32>
    %62 = arith.mulf %57, %59 : vector<8x32xf32>
    %63 = arith.addf %61, %62 : vector<8x32xf32>
    %64 = math.tanh %63 : vector<8x32xf32>
    %65 = arith.mulf %60, %64 : vector<8x32xf32>
    %c16_25 = arith.constant 16 : index
    %c0_26 = arith.constant 0 : index
    %66 = vector.load %arg12[%c16_25, %c0_26] : memref<64x32xf32, #tpu.memory_space<vmem>>, vector<8x32xf32>
    tpu.vector_store %arg12[%c16_25, %c0_26], %65 {strides = array<i32>} : memref<64x32xf32, #tpu.memory_space<vmem>>, vector<8x32xf32>,
    %c24 = arith.constant 24 : index
    %c0_27 = arith.constant 0 : index
    %67 = vector.load %arg11[%c24, %c0_27] : memref<64x128xf32, #tpu.memory_space<vmem>>, vector<8x128xf32>
    %cst_28 = arith.constant dense<0.000000e+00> : vector<8x128xf32>
    %68 = tpu.matmul %65, %7, %cst_28 {dimension_numbers = #tpu.dot_dimension_numbers<[1], [0], [0], [1], [0, 0, 1, 1], [], []>} : vector<8x32xf32>, vector<32x128xf32>, vector<8x128xf32> -> vector<8x128xf32>
    %69 = arith.addf %67, %68 : vector<8x128xf32>
    %70 = arith.negf %69 : vector<8x128xf32>
    %71 = math.exp %70 : vector<8x128xf32>
    %cst_29 = arith.constant 1.000000e+00 : f32
    %72 = vector.broadcast %cst_29 : f32 to vector<8x128xf32>
    %73 = arith.addf %72, %71 : vector<8x128xf32>
    %74 = arith.divf %72, %73 : vector<8x128xf32>
    %75 = math.tanh %69 : vector<8x128xf32>
    %76 = vector.extract_strided_slice %74 {offsets = [0, 0], sizes = [8, 32], strides = [1, 1]} : vector<8x128xf32> to vector<8x32xf32>
    %77 = vector.extract_strided_slice %74 {offsets = [0, 32], sizes = [8, 32], strides = [1, 1]} : vector<8x128xf32> to vector<8x32xf32>
    %78 = vector.extract_strided_slice %75 {offsets = [0, 64], sizes = [8, 32], strides = [1, 1]} : vector<8x128xf32> to vector<8x32xf32>
    %79 = vector.extract_strided_slice %74 {offsets = [0, 96], sizes = [8, 32], strides = [1, 1]} : vector<8x128xf32> to vector<8x32xf32>
    %80 = arith.mulf %77, %63 : vector<8x32xf32>
    %81 = arith.mulf %76, %78 : vector<8x32xf32>
    %82 = arith.addf %80, %81 : vector<8x32xf32>
    %83 = math.tanh %82 : vector<8x32xf32>
    %84 = arith.mulf %79, %83 : vector<8x32xf32>
    %c24_30 = arith.constant 24 : index
    %c0_31 = arith.constant 0 : index
    %85 = vector.load %arg12[%c24_30, %c0_31] : memref<64x32xf32, #tpu.memory_space<vmem>>, vector<8x32xf32>
    tpu.vector_store %arg12[%c24_30, %c0_31], %84 {strides = array<i32>} : memref<64x32xf32, #tpu.memory_space<vmem>>, vector<8x32xf32>,
    %c32 = arith.constant 32 : index
    %c0_32 = arith.constant 0 : index
    %86 = vector.load %arg11[%c32, %c0_32] : memref<64x128xf32, #tpu.memory_space<vmem>>, vector<8x128xf32>
    %cst_33 = arith.constant dense<0.000000e+00> : vector<8x128xf32>
    %87 = tpu.matmul %84, %7, %cst_33 {dimension_numbers = #tpu.dot_dimension_numbers<[1], [0], [0], [1], [0, 0, 1, 1], [], []>} : vector<8x32xf32>, vector<32x128xf32>, vector<8x128xf32> -> vector<8x128xf32>
    %88 = arith.addf %86, %87 : vector<8x128xf32>
    %89 = arith.negf %88 : vector<8x128xf32>
    %90 = math.exp %89 : vector<8x128xf32>
    %cst_34 = arith.constant 1.000000e+00 : f32
    %91 = vector.broadcast %cst_34 : f32 to vector<8x128xf32>
    %92 = arith.addf %91, %90 : vector<8x128xf32>
    %93 = arith.divf %91, %92 : vector<8x128xf32>
    %94 = math.tanh %88 : vector<8x128xf32>
    %95 = vector.extract_strided_slice %93 {offsets = [0, 0], sizes = [8, 32], strides = [1, 1]} : vector<8x128xf32> to vector<8x32xf32>
    %96 = vector.extract_strided_slice %93 {offsets = [0, 32], sizes = [8, 32], strides = [1, 1]} : vector<8x128xf32> to vector<8x32xf32>
    %97 = vector.extract_strided_slice %94 {offsets = [0, 64], sizes = [8, 32], strides = [1, 1]} : vector<8x128xf32> to vector<8x32xf32>
    %98 = vector.extract_strided_slice %93 {offsets = [0, 96], sizes = [8, 32], strides = [1, 1]} : vector<8x128xf32> to vector<8x32xf32>
    %99 = arith.mulf %96, %82 : vector<8x32xf32>
    %100 = arith.mulf %95, %97 : vector<8x32xf32>
    %101 = arith.addf %99, %100 : vector<8x32xf32>
    %102 = math.tanh %101 : vector<8x32xf32>
    %103 = arith.mulf %98, %102 : vector<8x32xf32>
    %c32_35 = arith.constant 32 : index
    %c0_36 = arith.constant 0 : index
    %104 = vector.load %arg12[%c32_35, %c0_36] : memref<64x32xf32, #tpu.memory_space<vmem>>, vector<8x32xf32>
    tpu.vector_store %arg12[%c32_35, %c0_36], %103 {strides = array<i32>} : memref<64x32xf32, #tpu.memory_space<vmem>>, vector<8x32xf32>,
    %c40 = arith.constant 40 : index
    %c0_37 = arith.constant 0 : index
    %105 = vector.load %arg11[%c40, %c0_37] : memref<64x128xf32, #tpu.memory_space<vmem>>, vector<8x128xf32>
    %cst_38 = arith.constant dense<0.000000e+00> : vector<8x128xf32>
    %106 = tpu.matmul %103, %7, %cst_38 {dimension_numbers = #tpu.dot_dimension_numbers<[1], [0], [0], [1], [0, 0, 1, 1], [], []>} : vector<8x32xf32>, vector<32x128xf32>, vector<8x128xf32> -> vector<8x128xf32>
    %107 = arith.addf %105, %106 : vector<8x128xf32>
    %108 = arith.negf %107 : vector<8x128xf32>
    %109 = math.exp %108 : vector<8x128xf32>
    %cst_39 = arith.constant 1.000000e+00 : f32
    %110 = vector.broadcast %cst_39 : f32 to vector<8x128xf32>
    %111 = arith.addf %110, %109 : vector<8x128xf32>
    %112 = arith.divf %110, %111 : vector<8x128xf32>
    %113 = math.tanh %107 : vector<8x128xf32>
    %114 = vector.extract_strided_slice %112 {offsets = [0, 0], sizes = [8, 32], strides = [1, 1]} : vector<8x128xf32> to vector<8x32xf32>
    %115 = vector.extract_strided_slice %112 {offsets = [0, 32], sizes = [8, 32], strides = [1, 1]} : vector<8x128xf32> to vector<8x32xf32>
    %116 = vector.extract_strided_slice %113 {offsets = [0, 64], sizes = [8, 32], strides = [1, 1]} : vector<8x128xf32> to vector<8x32xf32>
    %117 = vector.extract_strided_slice %112 {offsets = [0, 96], sizes = [8, 32], strides = [1, 1]} : vector<8x128xf32> to vector<8x32xf32>
    %118 = arith.mulf %115, %101 : vector<8x32xf32>
    %119 = arith.mulf %114, %116 : vector<8x32xf32>
    %120 = arith.addf %118, %119 : vector<8x32xf32>
    %121 = math.tanh %120 : vector<8x32xf32>
    %122 = arith.mulf %117, %121 : vector<8x32xf32>
    %c40_40 = arith.constant 40 : index
    %c0_41 = arith.constant 0 : index
    %123 = vector.load %arg12[%c40_40, %c0_41] : memref<64x32xf32, #tpu.memory_space<vmem>>, vector<8x32xf32>
    tpu.vector_store %arg12[%c40_40, %c0_41], %122 {strides = array<i32>} : memref<64x32xf32, #tpu.memory_space<vmem>>, vector<8x32xf32>,
    %c48 = arith.constant 48 : index
    %c0_42 = arith.constant 0 : index
    %124 = vector.load %arg11[%c48, %c0_42] : memref<64x128xf32, #tpu.memory_space<vmem>>, vector<8x128xf32>
    %cst_43 = arith.constant dense<0.000000e+00> : vector<8x128xf32>
    %125 = tpu.matmul %122, %7, %cst_43 {dimension_numbers = #tpu.dot_dimension_numbers<[1], [0], [0], [1], [0, 0, 1, 1], [], []>} : vector<8x32xf32>, vector<32x128xf32>, vector<8x128xf32> -> vector<8x128xf32>
    %126 = arith.addf %124, %125 : vector<8x128xf32>
    %127 = arith.negf %126 : vector<8x128xf32>
    %128 = math.exp %127 : vector<8x128xf32>
    %cst_44 = arith.constant 1.000000e+00 : f32
    %129 = vector.broadcast %cst_44 : f32 to vector<8x128xf32>
    %130 = arith.addf %129, %128 : vector<8x128xf32>
    %131 = arith.divf %129, %130 : vector<8x128xf32>
    %132 = math.tanh %126 : vector<8x128xf32>
    %133 = vector.extract_strided_slice %131 {offsets = [0, 0], sizes = [8, 32], strides = [1, 1]} : vector<8x128xf32> to vector<8x32xf32>
    %134 = vector.extract_strided_slice %131 {offsets = [0, 32], sizes = [8, 32], strides = [1, 1]} : vector<8x128xf32> to vector<8x32xf32>
    %135 = vector.extract_strided_slice %132 {offsets = [0, 64], sizes = [8, 32], strides = [1, 1]} : vector<8x128xf32> to vector<8x32xf32>
    %136 = vector.extract_strided_slice %131 {offsets = [0, 96], sizes = [8, 32], strides = [1, 1]} : vector<8x128xf32> to vector<8x32xf32>
    %137 = arith.mulf %134, %120 : vector<8x32xf32>
    %138 = arith.mulf %133, %135 : vector<8x32xf32>
    %139 = arith.addf %137, %138 : vector<8x32xf32>
    %140 = math.tanh %139 : vector<8x32xf32>
    %141 = arith.mulf %136, %140 : vector<8x32xf32>
    %c48_45 = arith.constant 48 : index
    %c0_46 = arith.constant 0 : index
    %142 = vector.load %arg12[%c48_45, %c0_46] : memref<64x32xf32, #tpu.memory_space<vmem>>, vector<8x32xf32>
    tpu.vector_store %arg12[%c48_45, %c0_46], %141 {strides = array<i32>} : memref<64x32xf32, #tpu.memory_space<vmem>>, vector<8x32xf32>,
    %c56 = arith.constant 56 : index
    %c0_47 = arith.constant 0 : index
    %143 = vector.load %arg11[%c56, %c0_47] : memref<64x128xf32, #tpu.memory_space<vmem>>, vector<8x128xf32>
    %cst_48 = arith.constant dense<0.000000e+00> : vector<8x128xf32>
    %144 = tpu.matmul %141, %7, %cst_48 {dimension_numbers = #tpu.dot_dimension_numbers<[1], [0], [0], [1], [0, 0, 1, 1], [], []>} : vector<8x32xf32>, vector<32x128xf32>, vector<8x128xf32> -> vector<8x128xf32>
    %145 = arith.addf %143, %144 : vector<8x128xf32>
    %146 = arith.negf %145 : vector<8x128xf32>
    %147 = math.exp %146 : vector<8x128xf32>
    %cst_49 = arith.constant 1.000000e+00 : f32
    %148 = vector.broadcast %cst_49 : f32 to vector<8x128xf32>
    %149 = arith.addf %148, %147 : vector<8x128xf32>
    %150 = arith.divf %148, %149 : vector<8x128xf32>
    %151 = math.tanh %145 : vector<8x128xf32>
    %152 = vector.extract_strided_slice %150 {offsets = [0, 0], sizes = [8, 32], strides = [1, 1]} : vector<8x128xf32> to vector<8x32xf32>
    %153 = vector.extract_strided_slice %150 {offsets = [0, 32], sizes = [8, 32], strides = [1, 1]} : vector<8x128xf32> to vector<8x32xf32>
    %154 = vector.extract_strided_slice %151 {offsets = [0, 64], sizes = [8, 32], strides = [1, 1]} : vector<8x128xf32> to vector<8x32xf32>
    %155 = vector.extract_strided_slice %150 {offsets = [0, 96], sizes = [8, 32], strides = [1, 1]} : vector<8x128xf32> to vector<8x32xf32>
    %156 = arith.mulf %153, %139 : vector<8x32xf32>
    %157 = arith.mulf %152, %154 : vector<8x32xf32>
    %158 = arith.addf %156, %157 : vector<8x32xf32>
    %159 = math.tanh %158 : vector<8x32xf32>
    %160 = arith.mulf %155, %159 : vector<8x32xf32>
    %c56_50 = arith.constant 56 : index
    %c0_51 = arith.constant 0 : index
    %161 = vector.load %arg12[%c56_50, %c0_51] : memref<64x32xf32, #tpu.memory_space<vmem>>, vector<8x32xf32>
    tpu.vector_store %arg12[%c56_50, %c0_51], %160 {strides = array<i32>} : memref<64x32xf32, #tpu.memory_space<vmem>>, vector<8x32xf32>,
    %c0_52 = arith.constant 0 : index
    %c0_53 = arith.constant 0 : index
    %162 = vector.load %arg12[%c0_52, %c0_53] : memref<64x32xf32, #tpu.memory_space<vmem>>, vector<64x32xf32>
    %c0_54 = arith.constant 0 : index
    %c0_55 = arith.constant 0 : index
    %163 = vector.load %arg5[%c0_54, %c0_55] : memref<32x128xf32, #tpu.memory_space<vmem>>, vector<32x128xf32>
    %cst_56 = arith.constant dense<0.000000e+00> : vector<64x128xf32>
    %164 = tpu.matmul %162, %163, %cst_56 {dimension_numbers = #tpu.dot_dimension_numbers<[1], [0], [0], [1], [0, 0, 1, 1], [], []>} : vector<64x32xf32>, vector<32x128xf32>, vector<64x128xf32> -> vector<64x128xf32>
    %c0_57 = arith.constant 0 : index
    %c0_58 = arith.constant 0 : index
    %165 = vector.load %arg7[%c0_57, %c0_58] : memref<1x128xf32, #tpu.memory_space<vmem>>, vector<1x128xf32>
    %166 = vector.broadcast %165 : vector<1x128xf32> to vector<64x128xf32>
    %167 = arith.addf %164, %166 : vector<64x128xf32>
    %c0_59 = arith.constant 0 : index
    %c0_60 = arith.constant 0 : index
    %168 = vector.load %arg11[%c0_59, %c0_60] : memref<64x128xf32, #tpu.memory_space<vmem>>, vector<64x128xf32>
    tpu.vector_store %arg11[%c0_59, %c0_60], %167 {strides = array<i32>} : memref<64x128xf32, #tpu.memory_space<vmem>>, vector<64x128xf32>,
    %c0_61 = arith.constant 0 : index
    %c0_62 = arith.constant 0 : index
    %169 = vector.load %arg6[%c0_61, %c0_62] : memref<32x128xf32, #tpu.memory_space<vmem>>, vector<32x128xf32>
    %cst_63 = arith.constant 0.000000e+00 : f32
    %170 = vector.broadcast %cst_63 : f32 to vector<8x32xf32>
    %cst_64 = arith.constant 0.000000e+00 : f32
    %171 = vector.broadcast %cst_64 : f32 to vector<8x32xf32>
    %c0_65 = arith.constant 0 : index
    %c0_66 = arith.constant 0 : index
    %172 = vector.load %arg11[%c0_65, %c0_66] : memref<64x128xf32, #tpu.memory_space<vmem>>, vector<8x128xf32>
    %cst_67 = arith.constant dense<0.000000e+00> : vector<8x128xf32>
    %173 = tpu.matmul %170, %169, %cst_67 {dimension_numbers = #tpu.dot_dimension_numbers<[1], [0], [0], [1], [0, 0, 1, 1], [], []>} : vector<8x32xf32>, vector<32x128xf32>, vector<8x128xf32> -> vector<8x128xf32>
    %174 = arith.addf %172, %173 : vector<8x128xf32>
    %175 = arith.negf %174 : vector<8x128xf32>
    %176 = math.exp %175 : vector<8x128xf32>
    %cst_68 = arith.constant 1.000000e+00 : f32
    %177 = vector.broadcast %cst_68 : f32 to vector<8x128xf32>
    %178 = arith.addf %177, %176 : vector<8x128xf32>
    %179 = arith.divf %177, %178 : vector<8x128xf32>
    %180 = math.tanh %174 : vector<8x128xf32>
    %181 = vector.extract_strided_slice %179 {offsets = [0, 0], sizes = [8, 32], strides = [1, 1]} : vector<8x128xf32> to vector<8x32xf32>
    %182 = vector.extract_strided_slice %179 {offsets = [0, 32], sizes = [8, 32], strides = [1, 1]} : vector<8x128xf32> to vector<8x32xf32>
    %183 = vector.extract_strided_slice %180 {offsets = [0, 64], sizes = [8, 32], strides = [1, 1]} : vector<8x128xf32> to vector<8x32xf32>
    %184 = vector.extract_strided_slice %179 {offsets = [0, 96], sizes = [8, 32], strides = [1, 1]} : vector<8x128xf32> to vector<8x32xf32>
    %185 = arith.mulf %182, %171 : vector<8x32xf32>
    %186 = arith.mulf %181, %183 : vector<8x32xf32>
    %187 = arith.addf %185, %186 : vector<8x32xf32>
    %188 = math.tanh %187 : vector<8x32xf32>
    %189 = arith.mulf %184, %188 : vector<8x32xf32>
    %c8_69 = arith.constant 8 : index
    %c0_70 = arith.constant 0 : index
    %190 = vector.load %arg11[%c8_69, %c0_70] : memref<64x128xf32, #tpu.memory_space<vmem>>, vector<8x128xf32>
    %cst_71 = arith.constant dense<0.000000e+00> : vector<8x128xf32>
    %191 = tpu.matmul %189, %169, %cst_71 {dimension_numbers = #tpu.dot_dimension_numbers<[1], [0], [0], [1], [0, 0, 1, 1], [], []>} : vector<8x32xf32>, vector<32x128xf32>, vector<8x128xf32> -> vector<8x128xf32>
    %192 = arith.addf %190, %191 : vector<8x128xf32>
    %193 = arith.negf %192 : vector<8x128xf32>
    %194 = math.exp %193 : vector<8x128xf32>
    %cst_72 = arith.constant 1.000000e+00 : f32
    %195 = vector.broadcast %cst_72 : f32 to vector<8x128xf32>
    %196 = arith.addf %195, %194 : vector<8x128xf32>
    %197 = arith.divf %195, %196 : vector<8x128xf32>
    %198 = math.tanh %192 : vector<8x128xf32>
    %199 = vector.extract_strided_slice %197 {offsets = [0, 0], sizes = [8, 32], strides = [1, 1]} : vector<8x128xf32> to vector<8x32xf32>
    %200 = vector.extract_strided_slice %197 {offsets = [0, 32], sizes = [8, 32], strides = [1, 1]} : vector<8x128xf32> to vector<8x32xf32>
    %201 = vector.extract_strided_slice %198 {offsets = [0, 64], sizes = [8, 32], strides = [1, 1]} : vector<8x128xf32> to vector<8x32xf32>
    %202 = vector.extract_strided_slice %197 {offsets = [0, 96], sizes = [8, 32], strides = [1, 1]} : vector<8x128xf32> to vector<8x32xf32>
    %203 = arith.mulf %200, %187 : vector<8x32xf32>
    %204 = arith.mulf %199, %201 : vector<8x32xf32>
    %205 = arith.addf %203, %204 : vector<8x32xf32>
    %206 = math.tanh %205 : vector<8x32xf32>
    %207 = arith.mulf %202, %206 : vector<8x32xf32>
    %c16_73 = arith.constant 16 : index
    %c0_74 = arith.constant 0 : index
    %208 = vector.load %arg11[%c16_73, %c0_74] : memref<64x128xf32, #tpu.memory_space<vmem>>, vector<8x128xf32>
    %cst_75 = arith.constant dense<0.000000e+00> : vector<8x128xf32>
    %209 = tpu.matmul %207, %169, %cst_75 {dimension_numbers = #tpu.dot_dimension_numbers<[1], [0], [0], [1], [0, 0, 1, 1], [], []>} : vector<8x32xf32>, vector<32x128xf32>, vector<8x128xf32> -> vector<8x128xf32>
    %210 = arith.addf %208, %209 : vector<8x128xf32>
    %211 = arith.negf %210 : vector<8x128xf32>
    %212 = math.exp %211 : vector<8x128xf32>
    %cst_76 = arith.constant 1.000000e+00 : f32
    %213 = vector.broadcast %cst_76 : f32 to vector<8x128xf32>
    %214 = arith.addf %213, %212 : vector<8x128xf32>
    %215 = arith.divf %213, %214 : vector<8x128xf32>
    %216 = math.tanh %210 : vector<8x128xf32>
    %217 = vector.extract_strided_slice %215 {offsets = [0, 0], sizes = [8, 32], strides = [1, 1]} : vector<8x128xf32> to vector<8x32xf32>
    %218 = vector.extract_strided_slice %215 {offsets = [0, 32], sizes = [8, 32], strides = [1, 1]} : vector<8x128xf32> to vector<8x32xf32>
    %219 = vector.extract_strided_slice %216 {offsets = [0, 64], sizes = [8, 32], strides = [1, 1]} : vector<8x128xf32> to vector<8x32xf32>
    %220 = vector.extract_strided_slice %215 {offsets = [0, 96], sizes = [8, 32], strides = [1, 1]} : vector<8x128xf32> to vector<8x32xf32>
    %221 = arith.mulf %218, %205 : vector<8x32xf32>
    %222 = arith.mulf %217, %219 : vector<8x32xf32>
    %223 = arith.addf %221, %222 : vector<8x32xf32>
    %224 = math.tanh %223 : vector<8x32xf32>
    %225 = arith.mulf %220, %224 : vector<8x32xf32>
    %c24_77 = arith.constant 24 : index
    %c0_78 = arith.constant 0 : index
    %226 = vector.load %arg11[%c24_77, %c0_78] : memref<64x128xf32, #tpu.memory_space<vmem>>, vector<8x128xf32>
    %cst_79 = arith.constant dense<0.000000e+00> : vector<8x128xf32>
    %227 = tpu.matmul %225, %169, %cst_79 {dimension_numbers = #tpu.dot_dimension_numbers<[1], [0], [0], [1], [0, 0, 1, 1], [], []>} : vector<8x32xf32>, vector<32x128xf32>, vector<8x128xf32> -> vector<8x128xf32>
    %228 = arith.addf %226, %227 : vector<8x128xf32>
    %229 = arith.negf %228 : vector<8x128xf32>
    %230 = math.exp %229 : vector<8x128xf32>
    %cst_80 = arith.constant 1.000000e+00 : f32
    %231 = vector.broadcast %cst_80 : f32 to vector<8x128xf32>
    %232 = arith.addf %231, %230 : vector<8x128xf32>
    %233 = arith.divf %231, %232 : vector<8x128xf32>
    %234 = math.tanh %228 : vector<8x128xf32>
    %235 = vector.extract_strided_slice %233 {offsets = [0, 0], sizes = [8, 32], strides = [1, 1]} : vector<8x128xf32> to vector<8x32xf32>
    %236 = vector.extract_strided_slice %233 {offsets = [0, 32], sizes = [8, 32], strides = [1, 1]} : vector<8x128xf32> to vector<8x32xf32>
    %237 = vector.extract_strided_slice %234 {offsets = [0, 64], sizes = [8, 32], strides = [1, 1]} : vector<8x128xf32> to vector<8x32xf32>
    %238 = vector.extract_strided_slice %233 {offsets = [0, 96], sizes = [8, 32], strides = [1, 1]} : vector<8x128xf32> to vector<8x32xf32>
    %239 = arith.mulf %236, %223 : vector<8x32xf32>
    %240 = arith.mulf %235, %237 : vector<8x32xf32>
    %241 = arith.addf %239, %240 : vector<8x32xf32>
    %242 = math.tanh %241 : vector<8x32xf32>
    %243 = arith.mulf %238, %242 : vector<8x32xf32>
    %c32_81 = arith.constant 32 : index
    %c0_82 = arith.constant 0 : index
    %244 = vector.load %arg11[%c32_81, %c0_82] : memref<64x128xf32, #tpu.memory_space<vmem>>, vector<8x128xf32>
    %cst_83 = arith.constant dense<0.000000e+00> : vector<8x128xf32>
    %245 = tpu.matmul %243, %169, %cst_83 {dimension_numbers = #tpu.dot_dimension_numbers<[1], [0], [0], [1], [0, 0, 1, 1], [], []>} : vector<8x32xf32>, vector<32x128xf32>, vector<8x128xf32> -> vector<8x128xf32>
    %246 = arith.addf %244, %245 : vector<8x128xf32>
    %247 = arith.negf %246 : vector<8x128xf32>
    %248 = math.exp %247 : vector<8x128xf32>
    %cst_84 = arith.constant 1.000000e+00 : f32
    %249 = vector.broadcast %cst_84 : f32 to vector<8x128xf32>
    %250 = arith.addf %249, %248 : vector<8x128xf32>
    %251 = arith.divf %249, %250 : vector<8x128xf32>
    %252 = math.tanh %246 : vector<8x128xf32>
    %253 = vector.extract_strided_slice %251 {offsets = [0, 0], sizes = [8, 32], strides = [1, 1]} : vector<8x128xf32> to vector<8x32xf32>
    %254 = vector.extract_strided_slice %251 {offsets = [0, 32], sizes = [8, 32], strides = [1, 1]} : vector<8x128xf32> to vector<8x32xf32>
    %255 = vector.extract_strided_slice %252 {offsets = [0, 64], sizes = [8, 32], strides = [1, 1]} : vector<8x128xf32> to vector<8x32xf32>
    %256 = vector.extract_strided_slice %251 {offsets = [0, 96], sizes = [8, 32], strides = [1, 1]} : vector<8x128xf32> to vector<8x32xf32>
    %257 = arith.mulf %254, %241 : vector<8x32xf32>
    %258 = arith.mulf %253, %255 : vector<8x32xf32>
    %259 = arith.addf %257, %258 : vector<8x32xf32>
    %260 = math.tanh %259 : vector<8x32xf32>
    %261 = arith.mulf %256, %260 : vector<8x32xf32>
    %c40_85 = arith.constant 40 : index
    %c0_86 = arith.constant 0 : index
    %262 = vector.load %arg11[%c40_85, %c0_86] : memref<64x128xf32, #tpu.memory_space<vmem>>, vector<8x128xf32>
    %cst_87 = arith.constant dense<0.000000e+00> : vector<8x128xf32>
    %263 = tpu.matmul %261, %169, %cst_87 {dimension_numbers = #tpu.dot_dimension_numbers<[1], [0], [0], [1], [0, 0, 1, 1], [], []>} : vector<8x32xf32>, vector<32x128xf32>, vector<8x128xf32> -> vector<8x128xf32>
    %264 = arith.addf %262, %263 : vector<8x128xf32>
    %265 = arith.negf %264 : vector<8x128xf32>
    %266 = math.exp %265 : vector<8x128xf32>
    %cst_88 = arith.constant 1.000000e+00 : f32
    %267 = vector.broadcast %cst_88 : f32 to vector<8x128xf32>
    %268 = arith.addf %267, %266 : vector<8x128xf32>
    %269 = arith.divf %267, %268 : vector<8x128xf32>
    %270 = math.tanh %264 : vector<8x128xf32>
    %271 = vector.extract_strided_slice %269 {offsets = [0, 0], sizes = [8, 32], strides = [1, 1]} : vector<8x128xf32> to vector<8x32xf32>
    %272 = vector.extract_strided_slice %269 {offsets = [0, 32], sizes = [8, 32], strides = [1, 1]} : vector<8x128xf32> to vector<8x32xf32>
    %273 = vector.extract_strided_slice %270 {offsets = [0, 64], sizes = [8, 32], strides = [1, 1]} : vector<8x128xf32> to vector<8x32xf32>
    %274 = vector.extract_strided_slice %269 {offsets = [0, 96], sizes = [8, 32], strides = [1, 1]} : vector<8x128xf32> to vector<8x32xf32>
    %275 = arith.mulf %272, %259 : vector<8x32xf32>
    %276 = arith.mulf %271, %273 : vector<8x32xf32>
    %277 = arith.addf %275, %276 : vector<8x32xf32>
    %278 = math.tanh %277 : vector<8x32xf32>
    %279 = arith.mulf %274, %278 : vector<8x32xf32>
    %c48_89 = arith.constant 48 : index
    %c0_90 = arith.constant 0 : index
    %280 = vector.load %arg11[%c48_89, %c0_90] : memref<64x128xf32, #tpu.memory_space<vmem>>, vector<8x128xf32>
    %cst_91 = arith.constant dense<0.000000e+00> : vector<8x128xf32>
    %281 = tpu.matmul %279, %169, %cst_91 {dimension_numbers = #tpu.dot_dimension_numbers<[1], [0], [0], [1], [0, 0, 1, 1], [], []>} : vector<8x32xf32>, vector<32x128xf32>, vector<8x128xf32> -> vector<8x128xf32>
    %282 = arith.addf %280, %281 : vector<8x128xf32>
    %283 = arith.negf %282 : vector<8x128xf32>
    %284 = math.exp %283 : vector<8x128xf32>
    %cst_92 = arith.constant 1.000000e+00 : f32
    %285 = vector.broadcast %cst_92 : f32 to vector<8x128xf32>
    %286 = arith.addf %285, %284 : vector<8x128xf32>
    %287 = arith.divf %285, %286 : vector<8x128xf32>
    %288 = math.tanh %282 : vector<8x128xf32>
    %289 = vector.extract_strided_slice %287 {offsets = [0, 0], sizes = [8, 32], strides = [1, 1]} : vector<8x128xf32> to vector<8x32xf32>
    %290 = vector.extract_strided_slice %287 {offsets = [0, 32], sizes = [8, 32], strides = [1, 1]} : vector<8x128xf32> to vector<8x32xf32>
    %291 = vector.extract_strided_slice %288 {offsets = [0, 64], sizes = [8, 32], strides = [1, 1]} : vector<8x128xf32> to vector<8x32xf32>
    %292 = vector.extract_strided_slice %287 {offsets = [0, 96], sizes = [8, 32], strides = [1, 1]} : vector<8x128xf32> to vector<8x32xf32>
    %293 = arith.mulf %290, %277 : vector<8x32xf32>
    %294 = arith.mulf %289, %291 : vector<8x32xf32>
    %295 = arith.addf %293, %294 : vector<8x32xf32>
    %296 = math.tanh %295 : vector<8x32xf32>
    %297 = arith.mulf %292, %296 : vector<8x32xf32>
    %c56_93 = arith.constant 56 : index
    %c0_94 = arith.constant 0 : index
    %298 = vector.load %arg11[%c56_93, %c0_94] : memref<64x128xf32, #tpu.memory_space<vmem>>, vector<8x128xf32>
    %cst_95 = arith.constant dense<0.000000e+00> : vector<8x128xf32>
    %299 = tpu.matmul %297, %169, %cst_95 {dimension_numbers = #tpu.dot_dimension_numbers<[1], [0], [0], [1], [0, 0, 1, 1], [], []>} : vector<8x32xf32>, vector<32x128xf32>, vector<8x128xf32> -> vector<8x128xf32>
    %300 = arith.addf %298, %299 : vector<8x128xf32>
    %301 = arith.negf %300 : vector<8x128xf32>
    %302 = math.exp %301 : vector<8x128xf32>
    %cst_96 = arith.constant 1.000000e+00 : f32
    %303 = vector.broadcast %cst_96 : f32 to vector<8x128xf32>
    %304 = arith.addf %303, %302 : vector<8x128xf32>
    %305 = arith.divf %303, %304 : vector<8x128xf32>
    %306 = math.tanh %300 : vector<8x128xf32>
    %307 = vector.extract_strided_slice %305 {offsets = [0, 0], sizes = [8, 32], strides = [1, 1]} : vector<8x128xf32> to vector<8x32xf32>
    %308 = vector.extract_strided_slice %305 {offsets = [0, 32], sizes = [8, 32], strides = [1, 1]} : vector<8x128xf32> to vector<8x32xf32>
    %309 = vector.extract_strided_slice %306 {offsets = [0, 64], sizes = [8, 32], strides = [1, 1]} : vector<8x128xf32> to vector<8x32xf32>
    %310 = vector.extract_strided_slice %305 {offsets = [0, 96], sizes = [8, 32], strides = [1, 1]} : vector<8x128xf32> to vector<8x32xf32>
    %311 = arith.mulf %308, %295 : vector<8x32xf32>
    %312 = arith.mulf %307, %309 : vector<8x32xf32>
    %313 = arith.addf %311, %312 : vector<8x32xf32>
    %314 = math.tanh %313 : vector<8x32xf32>
    %315 = arith.mulf %310, %314 : vector<8x32xf32>
    %c0_97 = arith.constant 0 : index
    %c0_98 = arith.constant 0 : index
    %316 = vector.load %arg8[%c0_97, %c0_98] : memref<32x8xf32, #tpu.memory_space<vmem>>, vector<32x8xf32>
    %cst_99 = arith.constant dense<0.000000e+00> : vector<8x8xf32>
    %317 = tpu.matmul %315, %316, %cst_99 {dimension_numbers = #tpu.dot_dimension_numbers<[1], [0], [0], [1], [0, 0, 1, 1], [], []>} : vector<8x32xf32>, vector<32x8xf32>, vector<8x8xf32> -> vector<8x8xf32>
    %c0_100 = arith.constant 0 : index
    %c0_101 = arith.constant 0 : index
    %318 = vector.load %arg9[%c0_100, %c0_101] : memref<1x8xf32, #tpu.memory_space<vmem>>, vector<1x8xf32>
    %319 = vector.broadcast %318 : vector<1x8xf32> to vector<8x8xf32>
    %320 = arith.addf %317, %319 : vector<8x8xf32>
    %c0_102 = arith.constant 0 : index
    %c0_103 = arith.constant 0 : index
    %321 = vector.load %arg10[%c0_102, %c0_103] : memref<8x8xf32, #tpu.memory_space<vmem>>, vector<8x8xf32>
    tpu.vector_store %arg10[%c0_102, %c0_103], %320 {strides = array<i32>} : memref<8x8xf32, #tpu.memory_space<vmem>>, vector<8x8xf32>,
    return
  }
  func.func @transform_0(%arg0: i32) -> (i32, i32) {
    %c0_i32 = arith.constant 0 : i32
    %c0_i32_0 = arith.constant 0 : i32
    %c0_i32_1 = arith.constant 0 : i32
    return %c0_i32, %c0_i32_0 : i32, i32
  }
  func.func @transform_1(%arg0: i32) -> (i32, i32) {
    %c0_i32 = arith.constant 0 : i32
    %c0_i32_0 = arith.constant 0 : i32
    %c0_i32_1 = arith.constant 0 : i32
    return %c0_i32, %c0_i32_0 : i32, i32
  }
  func.func @transform_2(%arg0: i32) -> (i32, i32) {
    %c0_i32 = arith.constant 0 : i32
    %c0_i32_0 = arith.constant 0 : i32
    %c0_i32_1 = arith.constant 0 : i32
    return %c0_i32, %c0_i32_0 : i32, i32
  }
  func.func @transform_3(%arg0: i32) -> (i32, i32) {
    %c0_i32 = arith.constant 0 : i32
    %c0_i32_0 = arith.constant 0 : i32
    %c0_i32_1 = arith.constant 0 : i32
    return %c0_i32, %c0_i32_0 : i32, i32
  }
  func.func @transform_4(%arg0: i32) -> (i32, i32) {
    %c0_i32 = arith.constant 0 : i32
    %c0_i32_0 = arith.constant 0 : i32
    %c0_i32_1 = arith.constant 0 : i32
    return %c0_i32, %c0_i32_0 : i32, i32
  }
  func.func @transform_5(%arg0: i32) -> (i32, i32) {
    %c0_i32 = arith.constant 0 : i32
    %c0_i32_0 = arith.constant 0 : i32
    %c0_i32_1 = arith.constant 0 : i32
    return %c0_i32, %c0_i32_0 : i32, i32
  }
  func.func @transform_6(%arg0: i32) -> (i32, i32) {
    %c0_i32 = arith.constant 0 : i32
    %c0_i32_0 = arith.constant 0 : i32
    %c0_i32_1 = arith.constant 0 : i32
    return %c0_i32, %c0_i32_0 : i32, i32
  }
  func.func @transform_7(%arg0: i32) -> (i32, i32) {
    %c0_i32 = arith.constant 0 : i32
    %c0_i32_0 = arith.constant 0 : i32
    %c0_i32_1 = arith.constant 0 : i32
    return %c0_i32, %c0_i32_0 : i32, i32
  }
  func.func @transform_8(%arg0: i32) -> (i32, i32) {
    %c0_i32 = arith.constant 0 : i32
    %c0_i32_0 = arith.constant 0 : i32
    %c0_i32_1 = arith.constant 0 : i32
    return %c0_i32, %c0_i32_0 : i32, i32
  }
  func.func @transform_9(%arg0: i32) -> (i32, i32) {
    %c0_i32 = arith.constant 0 : i32
    %c0_i32_0 = arith.constant 0 : i32
    %c0_i32_1 = arith.constant 0 : i32
    return %c0_i32, %c0_i32_0 : i32, i32
  }
}

</mosaic_0001>

<llo_original>
// kernel: tpu_custom_call.1
$region0: #{tpu_custom_call.1}
  #allocation0 [shape = 'u32[]', space=smem, size = 0x4, offset = 0x4, fixed_abs, tag = 'smem constant byte address 0x4 - core index']
  #allocation1 [shape = 'u32[144,128]{1,0:T(1,128)}', space=vmem, size = 0x12000, scoped, tag = 'internal scratch']
  #allocation2 [shape = 'f32[64,128]{1,0:T(8,128)}', space=vmem, size = 0x8000, scoped, tag = 'scratch operand']
  #allocation3 [shape = 'f32[64,32]{1,0:T(8,128)}', space=vmem, size = 0x8000, scoped, tag = 'scratch operand']
  %s0 = inlined_call_operand.vmem [shape: f32[64,16], index: 0, kind: input, shape index: {}]
  %s1 = inlined_call_operand.vmem [shape: f32[16,128], index: 1, kind: input, shape index: {}]
  %s2 = inlined_call_operand.vmem [shape: f32[32,128], index: 2, kind: input, shape index: {}]
  %s3 = inlined_call_operand.vmem [shape: f32[1,128], index: 3, kind: input, shape index: {}]
  %s4 = inlined_call_operand.vmem [shape: f32[32,128], index: 4, kind: input, shape index: {}]
  %s5 = inlined_call_operand.vmem [shape: f32[32,128], index: 5, kind: input, shape index: {}]
  %s6 = inlined_call_operand.vmem [shape: f32[1,128], index: 6, kind: input, shape index: {}]
  %s7 = inlined_call_operand.vmem [shape: f32[32,8], index: 7, kind: input, shape index: {}]
  %s8 = inlined_call_operand.vmem [shape: f32[1,8], index: 8, kind: input, shape index: {}]
  %s9 = inlined_call_operand.hbm [shape: f32[8,8], index: 9, kind: output, shape index: {}]
  %s10 = sld [smem:[#allocation0]]
  $region46: #{tpu_custom_call.1} parent=0
    _
  %s12 = ssub.s32 1, %s10
  %s13 = scalar_select 0, %s12, %s10
  $region1: #{tpu_custom_call.1} parent=0
    #allocation4 [shape = 'u8[4096]{0}', space=vmem, size = 0x1000, scoped, tag = 'output window, operand 0, single buffered']
    #allocation5 [shape = 's32[1]{0}', space=sflag, size = 0x4, scoped, tag = 'scoped memory for tpu_custom_call.1']
    %14 = vsyncpa [#allocation5], 0
    // Predicated region
    $region2: #{tpu_custom_call.1} parent=1 // pred_check
      _
    $region3: #{tpu_custom_call.1} parent=1 // pred_check_branch
      %16 = sbr.rel (0) target = $region5
    $region4: #{tpu_custom_call.1} parent=1 // pred_region
      _
    $region5: #{tpu_custom_call.1} parent=1 // pred_fallthru
      _
    // Predicated region
    $region6: #{tpu_custom_call.1} parent=1 // pred_check
      _
    $region7: #{tpu_custom_call.1} parent=1 // pred_check_branch
      %18 = sbr.rel (0) target = $region9
    $region8: #{tpu_custom_call.1} parent=1 // pred_region
      _
    $region9: #{tpu_custom_call.1} parent=1 // pred_fallthru
      _
    // Predicated region
    $region10: #{tpu_custom_call.1} parent=1 // pred_check
      _
    $region11: #{tpu_custom_call.1} parent=1 // pred_check_branch
      %20 = sbr.rel (0) target = $region13
    $region12: #{tpu_custom_call.1} parent=1 // pred_region
      _
    $region13: #{tpu_custom_call.1} parent=1 // pred_fallthru
      _
    // Predicated region
    $region14: #{tpu_custom_call.1} parent=1 // pred_check
      _
    $region15: #{tpu_custom_call.1} parent=1 // pred_check_branch
      %22 = sbr.rel (0) target = $region17
    $region16: #{tpu_custom_call.1} parent=1 // pred_region
      _
    $region17: #{tpu_custom_call.1} parent=1 // pred_fallthru
      _
    // Predicated region
    $region18: #{tpu_custom_call.1} parent=1 // pred_check
      _
    $region19: #{tpu_custom_call.1} parent=1 // pred_check_branch
      %24 = sbr.rel (0) target = $region21
    $region20: #{tpu_custom_call.1} parent=1 // pred_region
      _
    $region21: #{tpu_custom_call.1} parent=1 // pred_fallthru
      _
    // Predicated region
    $region22: #{tpu_custom_call.1} parent=1 // pred_check
      _
    $region23: #{tpu_custom_call.1} parent=1 // pred_check_branch
      %26 = sbr.rel (0) target = $region25
    $region24: #{tpu_custom_call.1} parent=1 // pred_region
      _
    $region25: #{tpu_custom_call.1} parent=1 // pred_fallthru
      _
    // Predicated region
    $region26: #{tpu_custom_call.1} parent=1 // pred_check
      _
    $region27: #{tpu_custom_call.1} parent=1 // pred_check_branch
      %28 = sbr.rel (0) target = $region29
    $region28: #{tpu_custom_call.1} parent=1 // pred_region
      _
    $region29: #{tpu_custom_call.1} parent=1 // pred_fallthru
      _
    // Predicated region
    $region30: #{tpu_custom_call.1} parent=1 // pred_check
      _
    $region31: #{tpu_custom_call.1} parent=1 // pred_check_branch
      %30 = sbr.rel (0) target = $region33
    $region32: #{tpu_custom_call.1} parent=1 // pred_region
      _
    $region33: #{tpu_custom_call.1} parent=1 // pred_fallthru
      _
    // Predicated region
    $region34: #{tpu_custom_call.1} parent=1 // pred_check
      _
    $region35: #{tpu_custom_call.1} parent=1 // pred_check_branch
      %32 = sbr.rel (0) target = $region37
    $region36: #{tpu_custom_call.1} parent=1 // pred_region
      _
    $region37: #{tpu_custom_call.1} parent=1 // pred_fallthru
      _
    %v33 = vld [vmem:[%s0] sm:$0xff]
    %v34 = vld [vmem:[%s0 + $0x8] sm:$0xff]
    %v35 = vld [vmem:[%s0 + $0x10] sm:$0xff]
    %v36 = vld [vmem:[%s0 + $0x18] sm:$0xff]
    %v37 = vld [vmem:[%s0 + $0x20] sm:$0xff]
    %v38 = vld [vmem:[%s0 + $0x28] sm:$0xff]
    %v39 = vld [vmem:[%s0 + $0x30] sm:$0xff]
    %v40 = vld [vmem:[%s0 + $0x38] sm:$0xff]
    %v41 = vld [vmem:[%s1] sm:$0xff]
    %v42 = vld [vmem:[%s1 + $0x8] sm:$0xff]
    %v43 = vld [vmem:[%s3] sm:$0x1]
    %v45 = vlaneseq
    %v46 = vshrl.u32 %v45, 7
    %v47 = vsub.s32 0, %v46
    %v48 = vrot.slane %v43, %v47
    %vm50 = vcmask 130048
    %v52 = vsel %vm50, %v33, 0
    %v55 = vsel %vm50, %v34, 0
    %v58 = vsel %vm50, %v35, 0
    %v61 = vsel %vm50, %v36, 0
    %v64 = vsel %vm50, %v37, 0
    %v67 = vsel %vm50, %v38, 0
    %v70 = vsel %vm50, %v39, 0
    %v73 = vsel %vm50, %v40, 0
    %75 = vmatprep.subr.mxu0 0.0
    %76 = vmatpush1.msra.mxu0 %v41
    %77 = vmatprep.subr.mxu0 0.0
    %78 = vmatpush1.msra.mxu0 %v42
    %79 = vmatprep.subr.mxu0 0.0
    %80 = vmatpush1.msra.mxu0 0.0
    %81 = vmatprep.subr.mxu0 0.0
    %82 = vmatpush1.msra.mxu0 0.0
    %83 = vmatprep.subr.mxu0 0.0
    %84 = vmatpush1.msra.mxu0 0.0
    %85 = vmatprep.subr.mxu0 0.0
    %86 = vmatpush1.msra.mxu0 0.0
    %87 = vmatprep.subr.mxu0 0.0
    %88 = vmatpush1.msra.mxu0 0.0
    %89 = vmatprep.subr.mxu0 0.0
    %90 = vmatpush1.msra.mxu0 0.0
    %91 = vmatprep.subr.mxu0 0.0
    %92 = vmatpush1.msra.mxu0 0.0
    %93 = vmatprep.subr.mxu0 0.0
    %94 = vmatpush1.msra.mxu0 0.0
    %95 = vmatprep.subr.mxu0 0.0
    %96 = vmatpush1.msra.mxu0 0.0
    %97 = vmatprep.subr.mxu0 0.0
    %98 = vmatpush1.msra.mxu0 0.0
    %99 = vmatprep.subr.mxu0 0.0
    %100 = vmatpush1.msra.mxu0 0.0
    %101 = vmatprep.subr.mxu0 0.0
    %102 = vmatpush1.msra.mxu0 0.0
    %103 = vmatprep.subr.mxu0 0.0
    %104 = vmatpush1.msra.mxu0 0.0
    %105 = vmatprep.subr.mxu0 0.0
    %106 = vmatpush1.msra.mxu0 0.0
    %107 = vmatprep.subr.mxu0 0.0
    %108 = vmatpush1.msra.mxu0 0.0
    %109 = vmatprep.subr.mxu0 0.0
    %110 = vmatpush1.msra.mxu0 0.0
    %111 = vmatprep.subr.mxu0 0.0
    %112 = vmatpush1.msra.mxu0 0.0
    %113 = vmatprep.subr.mxu0 0.0
    %114 = vmatpush1.msra.mxu0 0.0
    %115 = vmatprep.subr.mxu0 0.0
    %116 = vmatpush1.msra.mxu0 0.0
    %117 = vmatprep.subr.mxu0 0.0
    %118 = vmatpush1.msra.mxu0 0.0
    %119 = vmatprep.subr.mxu0 0.0
    %120 = vmatpush1.msra.mxu0 0.0
    %121 = vmatprep.subr.mxu0 0.0
    %122 = vmatpush1.msra.mxu0 0.0
    %123 = vmatprep.subr.mxu0 0.0
    %124 = vmatpush1.msra.mxu0 0.0
    %125 = vmatprep.subr.mxu0 0.0
    %126 = vmatpush1.msra.mxu0 0.0
    %127 = vmatprep.subr.mxu0 0.0
    %128 = vmatpush1.msra.mxu0 0.0
    %129 = vmatprep.subr.mxu0 0.0
    %130 = vmatpush1.msra.mxu0 0.0
    %131 = vmatprep.subr.mxu0 0.0
    %132 = vmatpush1.msra.mxu0 0.0
    %133 = vmatprep.subr.mxu0 0.0
    %134 = vmatpush1.msra.mxu0 0.0
    %135 = vmatprep.subr.mxu0 0.0
    %136 = vmatpush1.msra.mxu0 0.0
    %137 = vmatprep.subr.mxu0 0.0
    %138 = vmatpush1.msra.mxu0 0.0
    %139 = vmatprep.mubr.f32.mxu0 0.0
    %140 = vmatmul.mubr.f32.gmra.mrb[0].mxu0 %v52
    %v141 = vpop.f32.mrb[0].mxu0
    %v142 = vadd.f32 %v48, %v141
    %v143 = vpop.f32.mrb[0].mxu0
    %144 = vmatprep.mubr.f32.mxu0 0.0
    %145 = vmatmul.mubr.f32.gmra.mrb[0].mxu0 %v55
    %v146 = vpop.f32.mrb[0].mxu0
    %v147 = vadd.f32 %v48, %v146
    %v148 = vpop.f32.mrb[0].mxu0
    %149 = vmatprep.mubr.f32.mxu0 0.0
    %150 = vmatmul.mubr.f32.gmra.mrb[0].mxu0 %v58
    %v151 = vpop.f32.mrb[0].mxu0
    %v152 = vadd.f32 %v48, %v151
    %v153 = vpop.f32.mrb[0].mxu0
    %154 = vmatprep.mubr.f32.mxu0 0.0
    %155 = vmatmul.mubr.f32.gmra.mrb[0].mxu0 %v61
    %v156 = vpop.f32.mrb[0].mxu0
    %v157 = vadd.f32 %v48, %v156
    %v158 = vpop.f32.mrb[0].mxu0
    %159 = vmatprep.mubr.f32.mxu0 0.0
    %160 = vmatmul.mubr.f32.gmra.mrb[0].mxu0 %v64
    %v161 = vpop.f32.mrb[0].mxu0
    %v162 = vadd.f32 %v48, %v161
    %v163 = vpop.f32.mrb[0].mxu0
    %164 = vmatprep.mubr.f32.mxu0 0.0
    %165 = vmatmul.mubr.f32.gmra.mrb[0].mxu0 %v67
    %v166 = vpop.f32.mrb[0].mxu0
    %v167 = vadd.f32 %v48, %v166
    %v168 = vpop.f32.mrb[0].mxu0
    %169 = vmatprep.mubr.f32.mxu0 0.0
    %170 = vmatmul.mubr.f32.gmra.mrb[0].mxu0 %v70
    %v171 = vpop.f32.mrb[0].mxu0
    %v172 = vadd.f32 %v48, %v171
    %v173 = vpop.f32.mrb[0].mxu0
    %174 = vmatprep.mubr.f32.mxu0 0.0
    %175 = vmatmul.mubr.f32.gmra.mrb[0].mxu0 %v73
    %v176 = vpop.f32.mrb[0].mxu0
    %v177 = vadd.f32 %v48, %v176
    %v178 = vpop.f32.mrb[0].mxu0
    %179 = vdwg.mxu0
    %180 = vst [vmem:[#allocation2] sm:$0xff] %v142
    %181 = vst [vmem:[#allocation2 + $0x8] sm:$0xff] %v147
    %182 = vst [vmem:[#allocation2 + $0x10] sm:$0xff] %v152
    %183 = vst [vmem:[#allocation2 + $0x18] sm:$0xff] %v157
    %184 = vst [vmem:[#allocation2 + $0x20] sm:$0xff] %v162
    %185 = vst [vmem:[#allocation2 + $0x28] sm:$0xff] %v167
    %186 = vst [vmem:[#allocation2 + $0x30] sm:$0xff] %v172
    %187 = vst [vmem:[#allocation2 + $0x38] sm:$0xff] %v177
    %v188 = vld [vmem:[%s2] sm:$0xff]
    %v189 = vld [vmem:[%s2 + $0x8] sm:$0xff]
    %v190 = vld [vmem:[%s2 + $0x10] sm:$0xff]
    %v191 = vld [vmem:[%s2 + $0x18] sm:$0xff]
    %v192 = vld [vmem:[#allocation2] sm:$0xff]
    %vm193 = vcmask 261120
    %v195 = vsel %vm193, 0.0, 0
    %197 = vmatprep.subr.mxu0 0.0
    %198 = vmatpush1.msra.mxu0 %v188
    %199 = vmatprep.subr.mxu0 0.0
    %200 = vmatpush1.msra.mxu0 %v189
    %201 = vmatprep.subr.mxu0 0.0
    %202 = vmatpush1.msra.mxu0 %v190
    %203 = vmatprep.subr.mxu0 0.0
    %204 = vmatpush1.msra.mxu0 %v191
    %205 = vmatprep.subr.mxu0 0.0
    %206 = vmatpush1.msra.mxu0 0.0
    %207 = vmatprep.subr.mxu0 0.0
    %208 = vmatpush1.msra.mxu0 0.0
    %209 = vmatprep.subr.mxu0 0.0
    %210 = vmatpush1.msra.mxu0 0.0
    %211 = vmatprep.subr.mxu0 0.0
    %212 = vmatpush1.msra.mxu0 0.0
    %213 = vmatprep.subr.mxu0 0.0
    %214 = vmatpush1.msra.mxu0 0.0
    %215 = vmatprep.subr.mxu0 0.0
    %216 = vmatpush1.msra.mxu0 0.0
    %217 = vmatprep.subr.mxu0 0.0
    %218 = vmatpush1.msra.mxu0 0.0
    %219 = vmatprep.subr.mxu0 0.0
    %220 = vmatpush1.msra.mxu0 0.0
    %221 = vmatprep.subr.mxu0 0.0
    %222 = vmatpush1.msra.mxu0 0.0
    %223 = vmatprep.subr.mxu0 0.0
    %224 = vmatpush1.msra.mxu0 0.0
    %225 = vmatprep.subr.mxu0 0.0
    %226 = vmatpush1.msra.mxu0 0.0
    %227 = vmatprep.subr.mxu0 0.0
    %228 = vmatpush1.msra.mxu0 0.0
    %229 = vmatprep.subr.mxu0 0.0
    %230 = vmatpush1.msra.mxu0 0.0
    %231 = vmatprep.subr.mxu0 0.0
    %232 = vmatpush1.msra.mxu0 0.0
    %233 = vmatprep.subr.mxu0 0.0
    %234 = vmatpush1.msra.mxu0 0.0
    %235 = vmatprep.subr.mxu0 0.0
    %236 = vmatpush1.msra.mxu0 0.0
    %237 = vmatprep.subr.mxu0 0.0
    %238 = vmatpush1.msra.mxu0 0.0
    %239 = vmatprep.subr.mxu0 0.0
    %240 = vmatpush1.msra.mxu0 0.0
    %241 = vmatprep.subr.mxu0 0.0
    %242 = vmatpush1.msra.mxu0 0.0
    %243 = vmatprep.subr.mxu0 0.0
    %244 = vmatpush1.msra.mxu0 0.0
    %245 = vmatprep.subr.mxu0 0.0
    %246 = vmatpush1.msra.mxu0 0.0
    %247 = vmatprep.subr.mxu0 0.0
    %248 = vmatpush1.msra.mxu0 0.0
    %249 = vmatprep.subr.mxu0 0.0
    %250 = vmatpush1.msra.mxu0 0.0
    %251 = vmatprep.subr.mxu0 0.0
    %252 = vmatpush1.msra.mxu0 0.0
    %253 = vmatprep.subr.mxu0 0.0
    %254 = vmatpush1.msra.mxu0 0.0
    %255 = vmatprep.subr.mxu0 0.0
    %256 = vmatpush1.msra.mxu0 0.0
    %257 = vmatprep.subr.mxu0 0.0
    %258 = vmatpush1.msra.mxu0 0.0
    %259 = vmatprep.subr.mxu0 0.0
    %260 = vmatpush1.msra.mxu0 0.0
    %261 = vmatprep.mubr.f32.mxu0 0.0
    %262 = vmatmul.mubr.f32.gmra.mrb[0].mxu0 %v195
    %v263 = vpop.f32.mrb[0].mxu0
    %v264 = vadd.f32 0.0, %v263
    %v265 = vpop.f32.mrb[0].mxu0
    %266 = vdwg.mxu0
    %v267 = vadd.f32 %v192, %v264
    %v268 = vxor.u32 %v267, 2147483648
    %v269 = vmul.f32 %v268, 1.442695
    %v270 = vpow.pop %v269
    %v271 = vadd.f32 %v270, 1.0
    %v272 = vrcp.pop %v271
    %v273 = vmul.f32 1.0, %v272
    %v274 = vtanh.pop %v267
    %v275 = vmul.f32 %v273, 0.0
    %277 = vrot.lane.b32.xlu0 %v274, 64
    %v278 = vpop.permute.xlu0 %277
    %v280 = vmul.f32 %v273, %v278
    %282 = vrot.lane.b32.xlu0 %v280, 32
    %v283 = vpop.permute.xlu0 %282
    %v285 = vadd.f32 %v275, %v283
    %v286 = vtanh.pop %v285
    %288 = vrot.lane.b32.xlu0 %v286, 64
    %v289 = vpop.permute.xlu0 %288
    %v291 = vmul.f32 %v273, %v289
    %293 = vrot.lane.b32.xlu0 %v291, 32
    %v294 = vpop.permute.xlu0 %293
    %296 = vst.msk [vmem:[#allocation3] sm:$0xff] %vm193, %v294
    %v297 = vld [vmem:[#allocation2 + $0x8] sm:$0xff]
    %v298 = vsel %vm193, %v294, 0
    %300 = vmatprep.subr.mxu0 0.0
    %301 = vmatpush1.msra.mxu0 %v188
    %302 = vmatprep.subr.mxu0 0.0
    %303 = vmatpush1.msra.mxu0 %v189
    %304 = vmatprep.subr.mxu0 0.0
    %305 = vmatpush1.msra.mxu0 %v190
    %306 = vmatprep.subr.mxu0 0.0
    %307 = vmatpush1.msra.mxu0 %v191
    %308 = vmatprep.subr.mxu0 0.0
    %309 = vmatpush1.msra.mxu0 0.0
    %310 = vmatprep.subr.mxu0 0.0
    %311 = vmatpush1.msra.mxu0 0.0
    %312 = vmatprep.subr.mxu0 0.0
    %313 = vmatpush1.msra.mxu0 0.0
    %314 = vmatprep.subr.mxu0 0.0
    %315 = vmatpush1.msra.mxu0 0.0
    %316 = vmatprep.subr.mxu0 0.0
    %317 = vmatpush1.msra.mxu0 0.0
    %318 = vmatprep.subr.mxu0 0.0
    %319 = vmatpush1.msra.mxu0 0.0
    %320 = vmatprep.subr.mxu0 0.0
    %321 = vmatpush1.msra.mxu0 0.0
    %322 = vmatprep.subr.mxu0 0.0
    %323 = vmatpush1.msra.mxu0 0.0
    %324 = vmatprep.subr.mxu0 0.0
    %325 = vmatpush1.msra.mxu0 0.0
    %326 = vmatprep.subr.mxu0 0.0
    %327 = vmatpush1.msra.mxu0 0.0
    %328 = vmatprep.subr.mxu0 0.0
    %329 = vmatpush1.msra.mxu0 0.0
    %330 = vmatprep.subr.mxu0 0.0
    %331 = vmatpush1.msra.mxu0 0.0
    %332 = vmatprep.subr.mxu0 0.0
    %333 = vmatpush1.msra.mxu0 0.0
    %334 = vmatprep.subr.mxu0 0.0
    %335 = vmatpush1.msra.mxu0 0.0
    %336 = vmatprep.subr.mxu0 0.0
    %337 = vmatpush1.msra.mxu0 0.0
    %338 = vmatprep.subr.mxu0 0.0
    %339 = vmatpush1.msra.mxu0 0.0
    %340 = vmatprep.subr.mxu0 0.0
    %341 = vmatpush1.msra.mxu0 0.0
    %342 = vmatprep.subr.mxu0 0.0
    %343 = vmatpush1.msra.mxu0 0.0
    %344 = vmatprep.subr.mxu0 0.0
    %345 = vmatpush1.msra.mxu0 0.0
    %346 = vmatprep.subr.mxu0 0.0
    %347 = vmatpush1.msra.mxu0 0.0
    %348 = vmatprep.subr.mxu0 0.0
    %349 = vmatpush1.msra.mxu0 0.0
    %350 = vmatprep.subr.mxu0 0.0
    %351 = vmatpush1.msra.mxu0 0.0
    %352 = vmatprep.subr.mxu0 0.0
    %353 = vmatpush1.msra.mxu0 0.0
    %354 = vmatprep.subr.mxu0 0.0
    %355 = vmatpush1.msra.mxu0 0.0
    %356 = vmatprep.subr.mxu0 0.0
    %357 = vmatpush1.msra.mxu0 0.0
    %358 = vmatprep.subr.mxu0 0.0
    %359 = vmatpush1.msra.mxu0 0.0
    %360 = vmatprep.subr.mxu0 0.0
    %361 = vmatpush1.msra.mxu0 0.0
    %362 = vmatprep.subr.mxu0 0.0
    %363 = vmatpush1.msra.mxu0 0.0
    %364 = vmatprep.mubr.f32.mxu0 0.0
    %365 = vmatmul.mubr.f32.gmra.mrb[0].mxu0 %v298
    %v366 = vpop.f32.mrb[0].mxu0
    %v367 = vadd.f32 0.0, %v366
    %v368 = vpop.f32.mrb[0].mxu0
    %369 = vdwg.mxu0
    %v370 = vadd.f32 %v297, %v367
    %v371 = vxor.u32 %v370, 2147483648
    %v372 = vmul.f32 %v371, 1.442695
    %v373 = vpow.pop %v372
    %v374 = vadd.f32 %v373, 1.0
    %v375 = vrcp.pop %v374
    %v376 = vmul.f32 1.0, %v375
    %v377 = vtanh.pop %v370
    %v378 = vmul.f32 %v376, %v285
    %380 = vrot.lane.b32.xlu0 %v377, 64
    %v381 = vpop.permute.xlu0 %380
    %v383 = vmul.f32 %v376, %v381
    %385 = vrot.lane.b32.xlu0 %v383, 32
    %v386 = vpop.permute.xlu0 %385
    %v388 = vadd.f32 %v378, %v386
    %v389 = vtanh.pop %v388
    %391 = vrot.lane.b32.xlu0 %v389, 64
    %v392 = vpop.permute.xlu0 %391
    %v394 = vmul.f32 %v376, %v392
    %396 = vrot.lane.b32.xlu0 %v394, 32
    %v397 = vpop.permute.xlu0 %396
    %399 = vst.msk [vmem:[#allocation3 + $0x8] sm:$0xff] %vm193, %v397
    %v400 = vld [vmem:[#allocation2 + $0x10] sm:$0xff]
    %v401 = vsel %vm193, %v397, 0
    %403 = vmatprep.subr.mxu0 0.0
    %404 = vmatpush1.msra.mxu0 %v188
    %405 = vmatprep.subr.mxu0 0.0
    %406 = vmatpush1.msra.mxu0 %v189
    %407 = vmatprep.subr.mxu0 0.0
    %408 = vmatpush1.msra.mxu0 %v190
    %409 = vmatprep.subr.mxu0 0.0
    %410 = vmatpush1.msra.mxu0 %v191
    %411 = vmatprep.subr.mxu0 0.0
    %412 = vmatpush1.msra.mxu0 0.0
    %413 = vmatprep.subr.mxu0 0.0
    %414 = vmatpush1.msra.mxu0 0.0
    %415 = vmatprep.subr.mxu0 0.0
    %416 = vmatpush1.msra.mxu0 0.0
    %417 = vmatprep.subr.mxu0 0.0
    %418 = vmatpush1.msra.mxu0 0.0
    %419 = vmatprep.subr.mxu0 0.0
    %420 = vmatpush1.msra.mxu0 0.0
    %421 = vmatprep.subr.mxu0 0.0
    %422 = vmatpush1.msra.mxu0 0.0
    %423 = vmatprep.subr.mxu0 0.0
    %424 = vmatpush1.msra.mxu0 0.0
    %425 = vmatprep.subr.mxu0 0.0
    %426 = vmatpush1.msra.mxu0 0.0
    %427 = vmatprep.subr.mxu0 0.0
    %428 = vmatpush1.msra.mxu0 0.0
    %429 = vmatprep.subr.mxu0 0.0
    %430 = vmatpush1.msra.mxu0 0.0
    %431 = vmatprep.subr.mxu0 0.0
    %432 = vmatpush1.msra.mxu0 0.0
    %433 = vmatprep.subr.mxu0 0.0
    %434 = vmatpush1.msra.mxu0 0.0
    %435 = vmatprep.subr.mxu0 0.0
    %436 = vmatpush1.msra.mxu0 0.0
    %437 = vmatprep.subr.mxu0 0.0
    %438 = vmatpush1.msra.mxu0 0.0
    %439 = vmatprep.subr.mxu0 0.0
    %440 = vmatpush1.msra.mxu0 0.0
    %441 = vmatprep.subr.mxu0 0.0
    %442 = vmatpush1.msra.mxu0 0.0
    %443 = vmatprep.subr.mxu0 0.0
    %444 = vmatpush1.msra.mxu0 0.0
    %445 = vmatprep.subr.mxu0 0.0
    %446 = vmatpush1.msra.mxu0 0.0
    %447 = vmatprep.subr.mxu0 0.0
    %448 = vmatpush1.msra.mxu0 0.0
    %449 = vmatprep.subr.mxu0 0.0
    %450 = vmatpush1.msra.mxu0 0.0
    %451 = vmatprep.subr.mxu0 0.0
    %452 = vmatpush1.msra.mxu0 0.0
    %453 = vmatprep.subr.mxu0 0.0
    %454 = vmatpush1.msra.mxu0 0.0
    %455 = vmatprep.subr.mxu0 0.0
    %456 = vmatpush1.msra.mxu0 0.0
    %457 = vmatprep.subr.mxu0 0.0
    %458 = vmatpush1.msra.mxu0 0.0
    %459 = vmatprep.subr.mxu0 0.0
    %460 = vmatpush1.msra.mxu0 0.0
    %461 = vmatprep.subr.mxu0 0.0
    %462 = vmatpush1.msra.mxu0 0.0
    %463 = vmatprep.subr.mxu0 0.0
    %464 = vmatpush1.msra.mxu0 0.0
    %465 = vmatprep.subr.mxu0 0.0
    %466 = vmatpush1.msra.mxu0 0.0
    %467 = vmatprep.mubr.f32.mxu0 0.0
    %468 = vmatmul.mubr.f32.gmra.mrb[0].mxu0 %v401
    %v469 = vpop.f32.mrb[0].mxu0
    %v470 = vadd.f32 0.0, %v469
    %v471 = vpop.f32.mrb[0].mxu0
    %472 = vdwg.mxu0
    %v473 = vadd.f32 %v400, %v470
    %v474 = vxor.u32 %v473, 2147483648
    %v475 = vmul.f32 %v474, 1.442695
    %v476 = vpow.pop %v475
    %v477 = vadd.f32 %v476, 1.0
    %v478 = vrcp.pop %v477
    %v479 = vmul.f32 1.0, %v478
    %v480 = vtanh.pop %v473
    %v481 = vmul.f32 %v479, %v388
    %483 = vrot.lane.b32.xlu0 %v480, 64
    %v484 = vpop.permute.xlu0 %483
    %v486 = vmul.f32 %v479, %v484
    %488 = vrot.lane.b32.xlu0 %v486, 32
    %v489 = vpop.permute.xlu0 %488
    %v491 = vadd.f32 %v481, %v489
    %v492 = vtanh.pop %v491
    %494 = vrot.lane.b32.xlu0 %v492, 64
    %v495 = vpop.permute.xlu0 %494
    %v497 = vmul.f32 %v479, %v495
    %499 = vrot.lane.b32.xlu0 %v497, 32
    %v500 = vpop.permute.xlu0 %499
    %502 = vst.msk [vmem:[#allocation3 + $0x10] sm:$0xff] %vm193, %v500
    %v503 = vld [vmem:[#allocation2 + $0x18] sm:$0xff]
    %v504 = vsel %vm193, %v500, 0
    %506 = vmatprep.subr.mxu0 0.0
    %507 = vmatpush1.msra.mxu0 %v188
    %508 = vmatprep.subr.mxu0 0.0
    %509 = vmatpush1.msra.mxu0 %v189
    %510 = vmatprep.subr.mxu0 0.0
    %511 = vmatpush1.msra.mxu0 %v190
    %512 = vmatprep.subr.mxu0 0.0
    %513 = vmatpush1.msra.mxu0 %v191
    %514 = vmatprep.subr.mxu0 0.0
    %515 = vmatpush1.msra.mxu0 0.0
    %516 = vmatprep.subr.mxu0 0.0
    %517 = vmatpush1.msra.mxu0 0.0
    %518 = vmatprep.subr.mxu0 0.0
    %519 = vmatpush1.msra.mxu0 0.0
    %520 = vmatprep.subr.mxu0 0.0
    %521 = vmatpush1.msra.mxu0 0.0
    %522 = vmatprep.subr.mxu0 0.0
    %523 = vmatpush1.msra.mxu0 0.0
    %524 = vmatprep.subr.mxu0 0.0
    %525 = vmatpush1.msra.mxu0 0.0
    %526 = vmatprep.subr.mxu0 0.0
    %527 = vmatpush1.msra.mxu0 0.0
    %528 = vmatprep.subr.mxu0 0.0
    %529 = vmatpush1.msra.mxu0 0.0
    %530 = vmatprep.subr.mxu0 0.0
    %531 = vmatpush1.msra.mxu0 0.0
    %532 = vmatprep.subr.mxu0 0.0
    %533 = vmatpush1.msra.mxu0 0.0
    %534 = vmatprep.subr.mxu0 0.0
    %535 = vmatpush1.msra.mxu0 0.0
    %536 = vmatprep.subr.mxu0 0.0
    %537 = vmatpush1.msra.mxu0 0.0
    %538 = vmatprep.subr.mxu0 0.0
    %539 = vmatpush1.msra.mxu0 0.0
    %540 = vmatprep.subr.mxu0 0.0
    %541 = vmatpush1.msra.mxu0 0.0
    %542 = vmatprep.subr.mxu0 0.0
    %543 = vmatpush1.msra.mxu0 0.0
    %544 = vmatprep.subr.mxu0 0.0
    %545 = vmatpush1.msra.mxu0 0.0
    %546 = vmatprep.subr.mxu0 0.0
    %547 = vmatpush1.msra.mxu0 0.0
    %548 = vmatprep.subr.mxu0 0.0
    %549 = vmatpush1.msra.mxu0 0.0
    %550 = vmatprep.subr.mxu0 0.0
    %551 = vmatpush1.msra.mxu0 0.0
    %552 = vmatprep.subr.mxu0 0.0
    %553 = vmatpush1.msra.mxu0 0.0
    %554 = vmatprep.subr.mxu0 0.0
    %555 = vmatpush1.msra.mxu0 0.0
    %556 = vmatprep.subr.mxu0 0.0
    %557 = vmatpush1.msra.mxu0 0.0
    %558 = vmatprep.subr.mxu0 0.0
    %559 = vmatpush1.msra.mxu0 0.0
    %560 = vmatprep.subr.mxu0 0.0
    %561 = vmatpush1.msra.mxu0 0.0
    %562 = vmatprep.subr.mxu0 0.0
    %563 = vmatpush1.msra.mxu0 0.0
    %564 = vmatprep.subr.mxu0 0.0
    %565 = vmatpush1.msra.mxu0 0.0
    %566 = vmatprep.subr.mxu0 0.0
    %567 = vmatpush1.msra.mxu0 0.0
    %568 = vmatprep.subr.mxu0 0.0
    %569 = vmatpush1.msra.mxu0 0.0
    %570 = vmatprep.mubr.f32.mxu0 0.0
    %571 = vmatmul.mubr.f32.gmra.mrb[0].mxu0 %v504
    %v572 = vpop.f32.mrb[0].mxu0
    %v573 = vadd.f32 0.0, %v572
    %v574 = vpop.f32.mrb[0].mxu0
    %575 = vdwg.mxu0
    %v576 = vadd.f32 %v503, %v573
    %v577 = vxor.u32 %v576, 2147483648
    %v578 = vmul.f32 %v577, 1.442695
    %v579 = vpow.pop %v578
    %v580 = vadd.f32 %v579, 1.0
    %v581 = vrcp.pop %v580
    %v582 = vmul.f32 1.0, %v581
    %v583 = vtanh.pop %v576
    %v584 = vmul.f32 %v582, %v491
    %586 = vrot.lane.b32.xlu0 %v583, 64
    %v587 = vpop.permute.xlu0 %586
    %v589 = vmul.f32 %v582, %v587
    %591 = vrot.lane.b32.xlu0 %v589, 32
    %v592 = vpop.permute.xlu0 %591
    %v594 = vadd.f32 %v584, %v592
    %v595 = vtanh.pop %v594
    %597 = vrot.lane.b32.xlu0 %v595, 64
    %v598 = vpop.permute.xlu0 %597
    %v600 = vmul.f32 %v582, %v598
    %602 = vrot.lane.b32.xlu0 %v600, 32
    %v603 = vpop.permute.xlu0 %602
    %605 = vst.msk [vmem:[#allocation3 + $0x18] sm:$0xff] %vm193, %v603
    %v606 = vld [vmem:[#allocation2 + $0x20] sm:$0xff]
    %v607 = vsel %vm193, %v603, 0
    %609 = vmatprep.subr.mxu0 0.0
    %610 = vmatpush1.msra.mxu0 %v188
    %611 = vmatprep.subr.mxu0 0.0
    %612 = vmatpush1.msra.mxu0 %v189
    %613 = vmatprep.subr.mxu0 0.0
    %614 = vmatpush1.msra.mxu0 %v190
    %615 = vmatprep.subr.mxu0 0.0
    %616 = vmatpush1.msra.mxu0 %v191
    %617 = vmatprep.subr.mxu0 0.0
    %618 = vmatpush1.msra.mxu0 0.0
    %619 = vmatprep.subr.mxu0 0.0
    %620 = vmatpush1.msra.mxu0 0.0
    %621 = vmatprep.subr.mxu0 0.0
    %622 = vmatpush1.msra.mxu0 0.0
    %623 = vmatprep.subr.mxu0 0.0
    %624 = vmatpush1.msra.mxu0 0.0
    %625 = vmatprep.subr.mxu0 0.0
    %626 = vmatpush1.msra.mxu0 0.0
    %627 = vmatprep.subr.mxu0 0.0
    %628 = vmatpush1.msra.mxu0 0.0
    %629 = vmatprep.subr.mxu0 0.0
    %630 = vmatpush1.msra.mxu0 0.0
    %631 = vmatprep.subr.mxu0 0.0
    %632 = vmatpush1.msra.mxu0 0.0
    %633 = vmatprep.subr.mxu0 0.0
    %634 = vmatpush1.msra.mxu0 0.0
    %635 = vmatprep.subr.mxu0 0.0
    %636 = vmatpush1.msra.mxu0 0.0
    %637 = vmatprep.subr.mxu0 0.0
    %638 = vmatpush1.msra.mxu0 0.0
    %639 = vmatprep.subr.mxu0 0.0
    %640 = vmatpush1.msra.mxu0 0.0
    %641 = vmatprep.subr.mxu0 0.0
    %642 = vmatpush1.msra.mxu0 0.0
    %643 = vmatprep.subr.mxu0 0.0
    %644 = vmatpush1.msra.mxu0 0.0
    %645 = vmatprep.subr.mxu0 0.0
    %646 = vmatpush1.msra.mxu0 0.0
    %647 = vmatprep.subr.mxu0 0.0
    %648 = vmatpush1.msra.mxu0 0.0
    %649 = vmatprep.subr.mxu0 0.0
    %650 = vmatpush1.msra.mxu0 0.0
    %651 = vmatprep.subr.mxu0 0.0
    %652 = vmatpush1.msra.mxu0 0.0
    %653 = vmatprep.subr.mxu0 0.0
    %654 = vmatpush1.msra.mxu0 0.0
    %655 = vmatprep.subr.mxu0 0.0
    %656 = vmatpush1.msra.mxu0 0.0
    %657 = vmatprep.subr.mxu0 0.0
    %658 = vmatpush1.msra.mxu0 0.0
    %659 = vmatprep.subr.mxu0 0.0
    %660 = vmatpush1.msra.mxu0 0.0
    %661 = vmatprep.subr.mxu0 0.0
    %662 = vmatpush1.msra.mxu0 0.0
    %663 = vmatprep.subr.mxu0 0.0
    %664 = vmatpush1.msra.mxu0 0.0
    %665 = vmatprep.subr.mxu0 0.0
    %666 = vmatpush1.msra.mxu0 0.0
    %667 = vmatprep.subr.mxu0 0.0
    %668 = vmatpush1.msra.mxu0 0.0
    %669 = vmatprep.subr.mxu0 0.0
    %670 = vmatpush1.msra.mxu0 0.0
    %671 = vmatprep.subr.mxu0 0.0
    %672 = vmatpush1.msra.mxu0 0.0
    %673 = vmatprep.mubr.f32.mxu0 0.0
    %674 = vmatmul.mubr.f32.gmra.mrb[0].mxu0 %v607
    %v675 = vpop.f32.mrb[0].mxu0
    %v676 = vadd.f32 0.0, %v675
    %v677 = vpop.f32.mrb[0].mxu0
    %678 = vdwg.mxu0
    %v679 = vadd.f32 %v606, %v676
    %v680 = vxor.u32 %v679, 2147483648
    %v681 = vmul.f32 %v680, 1.442695
    %v682 = vpow.pop %v681
    %v683 = vadd.f32 %v682, 1.0
    %v684 = vrcp.pop %v683
    %v685 = vmul.f32 1.0, %v684
    %v686 = vtanh.pop %v679
    %v687 = vmul.f32 %v685, %v594
    %689 = vrot.lane.b32.xlu0 %v686, 64
    %v690 = vpop.permute.xlu0 %689
    %v692 = vmul.f32 %v685, %v690
    %694 = vrot.lane.b32.xlu0 %v692, 32
    %v695 = vpop.permute.xlu0 %694
    %v697 = vadd.f32 %v687, %v695
    %v698 = vtanh.pop %v697
    %700 = vrot.lane.b32.xlu0 %v698, 64
    %v701 = vpop.permute.xlu0 %700
    %v703 = vmul.f32 %v685, %v701
    %705 = vrot.lane.b32.xlu0 %v703, 32
    %v706 = vpop.permute.xlu0 %705
    %708 = vst.msk [vmem:[#allocation3 + $0x20] sm:$0xff] %vm193, %v706
    %v709 = vld [vmem:[#allocation2 + $0x28] sm:$0xff]
    %v710 = vsel %vm193, %v706, 0
    %712 = vmatprep.subr.mxu0 0.0
    %713 = vmatpush1.msra.mxu0 %v188
    %714 = vmatprep.subr.mxu0 0.0
    %715 = vmatpush1.msra.mxu0 %v189
    %716 = vmatprep.subr.mxu0 0.0
    %717 = vmatpush1.msra.mxu0 %v190
    %718 = vmatprep.subr.mxu0 0.0
    %719 = vmatpush1.msra.mxu0 %v191
    %720 = vmatprep.subr.mxu0 0.0
    %721 = vmatpush1.msra.mxu0 0.0
    %722 = vmatprep.subr.mxu0 0.0
    %723 = vmatpush1.msra.mxu0 0.0
    %724 = vmatprep.subr.mxu0 0.0
    %725 = vmatpush1.msra.mxu0 0.0
    %726 = vmatprep.subr.mxu0 0.0
    %727 = vmatpush1.msra.mxu0 0.0
    %728 = vmatprep.subr.mxu0 0.0
    %729 = vmatpush1.msra.mxu0 0.0
    %730 = vmatprep.subr.mxu0 0.0
    %731 = vmatpush1.msra.mxu0 0.0
    %732 = vmatprep.subr.mxu0 0.0
    %733 = vmatpush1.msra.mxu0 0.0
    %734 = vmatprep.subr.mxu0 0.0
    %735 = vmatpush1.msra.mxu0 0.0
    %736 = vmatprep.subr.mxu0 0.0
    %737 = vmatpush1.msra.mxu0 0.0
    %738 = vmatprep.subr.mxu0 0.0
    %739 = vmatpush1.msra.mxu0 0.0
    %740 = vmatprep.subr.mxu0 0.0
    %741 = vmatpush1.msra.mxu0 0.0
    %742 = vmatprep.subr.mxu0 0.0
    %743 = vmatpush1.msra.mxu0 0.0
    %744 = vmatprep.subr.mxu0 0.0
    %745 = vmatpush1.msra.mxu0 0.0
    %746 = vmatprep.subr.mxu0 0.0
    %747 = vmatpush1.msra.mxu0 0.0
    %748 = vmatprep.subr.mxu0 0.0
    %749 = vmatpush1.msra.mxu0 0.0
    %750 = vmatprep.subr.mxu0 0.0
    %751 = vmatpush1.msra.mxu0 0.0
    %752 = vmatprep.subr.mxu0 0.0
    %753 = vmatpush1.msra.mxu0 0.0
    %754 = vmatprep.subr.mxu0 0.0
    %755 = vmatpush1.msra.mxu0 0.0
    %756 = vmatprep.subr.mxu0 0.0
    %757 = vmatpush1.msra.mxu0 0.0
    %758 = vmatprep.subr.mxu0 0.0
    %759 = vmatpush1.msra.mxu0 0.0
    %760 = vmatprep.subr.mxu0 0.0
    %761 = vmatpush1.msra.mxu0 0.0
    %762 = vmatprep.subr.mxu0 0.0
    %763 = vmatpush1.msra.mxu0 0.0
    %764 = vmatprep.subr.mxu0 0.0
    %765 = vmatpush1.msra.mxu0 0.0
    %766 = vmatprep.subr.mxu0 0.0
    %767 = vmatpush1.msra.mxu0 0.0
    %768 = vmatprep.subr.mxu0 0.0
    %769 = vmatpush1.msra.mxu0 0.0
    %770 = vmatprep.subr.mxu0 0.0
    %771 = vmatpush1.msra.mxu0 0.0
    %772 = vmatprep.subr.mxu0 0.0
    %773 = vmatpush1.msra.mxu0 0.0
    %774 = vmatprep.subr.mxu0 0.0
    %775 = vmatpush1.msra.mxu0 0.0
    %776 = vmatprep.mubr.f32.mxu0 0.0
    %777 = vmatmul.mubr.f32.gmra.mrb[0].mxu0 %v710
    %v778 = vpop.f32.mrb[0].mxu0
    %v779 = vadd.f32 0.0, %v778
    %v780 = vpop.f32.mrb[0].mxu0
    %781 = vdwg.mxu0
    %v782 = vadd.f32 %v709, %v779
    %v783 = vxor.u32 %v782, 2147483648
    %v784 = vmul.f32 %v783, 1.442695
    %v785 = vpow.pop %v784
    %v786 = vadd.f32 %v785, 1.0
    %v787 = vrcp.pop %v786
    %v788 = vmul.f32 1.0, %v787
    %v789 = vtanh.pop %v782
    %v790 = vmul.f32 %v788, %v697
    %792 = vrot.lane.b32.xlu0 %v789, 64
    %v793 = vpop.permute.xlu0 %792
    %v795 = vmul.f32 %v788, %v793
    %797 = vrot.lane.b32.xlu0 %v795, 32
    %v798 = vpop.permute.xlu0 %797
    %v800 = vadd.f32 %v790, %v798
    %v801 = vtanh.pop %v800
    %803 = vrot.lane.b32.xlu0 %v801, 64
    %v804 = vpop.permute.xlu0 %803
    %v806 = vmul.f32 %v788, %v804
    %808 = vrot.lane.b32.xlu0 %v806, 32
    %v809 = vpop.permute.xlu0 %808
    %811 = vst.msk [vmem:[#allocation3 + $0x28] sm:$0xff] %vm193, %v809
    %v812 = vld [vmem:[#allocation2 + $0x30] sm:$0xff]
    %v813 = vsel %vm193, %v809, 0
    %815 = vmatprep.subr.mxu0 0.0
    %816 = vmatpush1.msra.mxu0 %v188
    %817 = vmatprep.subr.mxu0 0.0
    %818 = vmatpush1.msra.mxu0 %v189
    %819 = vmatprep.subr.mxu0 0.0
    %820 = vmatpush1.msra.mxu0 %v190
    %821 = vmatprep.subr.mxu0 0.0
    %822 = vmatpush1.msra.mxu0 %v191
    %823 = vmatprep.subr.mxu0 0.0
    %824 = vmatpush1.msra.mxu0 0.0
    %825 = vmatprep.subr.mxu0 0.0
    %826 = vmatpush1.msra.mxu0 0.0
    %827 = vmatprep.subr.mxu0 0.0
    %828 = vmatpush1.msra.mxu0 0.0
    %829 = vmatprep.subr.mxu0 0.0
    %830 = vmatpush1.msra.mxu0 0.0
    %831 = vmatprep.subr.mxu0 0.0
    %832 = vmatpush1.msra.mxu0 0.0
    %833 = vmatprep.subr.mxu0 0.0
    %834 = vmatpush1.msra.mxu0 0.0
    %835 = vmatprep.subr.mxu0 0.0
    %836 = vmatpush1.msra.mxu0 0.0
    %837 = vmatprep.subr.mxu0 0.0
    %838 = vmatpush1.msra.mxu0 0.0
    %839 = vmatprep.subr.mxu0 0.0
    %840 = vmatpush1.msra.mxu0 0.0
    %841 = vmatprep.subr.mxu0 0.0
    %842 = vmatpush1.msra.mxu0 0.0
    %843 = vmatprep.subr.mxu0 0.0
    %844 = vmatpush1.msra.mxu0 0.0
    %845 = vmatprep.subr.mxu0 0.0
    %846 = vmatpush1.msra.mxu0 0.0
    %847 = vmatprep.subr.mxu0 0.0
    %848 = vmatpush1.msra.mxu0 0.0
    %849 = vmatprep.subr.mxu0 0.0
    %850 = vmatpush1.msra.mxu0 0.0
    %851 = vmatprep.subr.mxu0 0.0
    %852 = vmatpush1.msra.mxu0 0.0
    %853 = vmatprep.subr.mxu0 0.0
    %854 = vmatpush1.msra.mxu0 0.0
    %855 = vmatprep.subr.mxu0 0.0
    %856 = vmatpush1.msra.mxu0 0.0
    %857 = vmatprep.subr.mxu0 0.0
    %858 = vmatpush1.msra.mxu0 0.0
    %859 = vmatprep.subr.mxu0 0.0
    %860 = vmatpush1.msra.mxu0 0.0
    %861 = vmatprep.subr.mxu0 0.0
    %862 = vmatpush1.msra.mxu0 0.0
    %863 = vmatprep.subr.mxu0 0.0
    %864 = vmatpush1.msra.mxu0 0.0
    %865 = vmatprep.subr.mxu0 0.0
    %866 = vmatpush1.msra.mxu0 0.0
    %867 = vmatprep.subr.mxu0 0.0
    %868 = vmatpush1.msra.mxu0 0.0
    %869 = vmatprep.subr.mxu0 0.0
    %870 = vmatpush1.msra.mxu0 0.0
    %871 = vmatprep.subr.mxu0 0.0
    %872 = vmatpush1.msra.mxu0 0.0
    %873 = vmatprep.subr.mxu0 0.0
    %874 = vmatpush1.msra.mxu0 0.0
    %875 = vmatprep.subr.mxu0 0.0
    %876 = vmatpush1.msra.mxu0 0.0
    %877 = vmatprep.subr.mxu0 0.0
    %878 = vmatpush1.msra.mxu0 0.0
    %879 = vmatprep.mubr.f32.mxu0 0.0
    %880 = vmatmul.mubr.f32.gmra.mrb[0].mxu0 %v813
    %v881 = vpop.f32.mrb[0].mxu0
    %v882 = vadd.f32 0.0, %v881
    %v883 = vpop.f32.mrb[0].mxu0
    %884 = vdwg.mxu0
    %v885 = vadd.f32 %v812, %v882
    %v886 = vxor.u32 %v885, 2147483648
    %v887 = vmul.f32 %v886, 1.442695
    %v888 = vpow.pop %v887
    %v889 = vadd.f32 %v888, 1.0
    %v890 = vrcp.pop %v889
    %v891 = vmul.f32 1.0, %v890
    %v892 = vtanh.pop %v885
    %v893 = vmul.f32 %v891, %v800
    %895 = vrot.lane.b32.xlu0 %v892, 64
    %v896 = vpop.permute.xlu0 %895
    %v898 = vmul.f32 %v891, %v896
    %900 = vrot.lane.b32.xlu0 %v898, 32
    %v901 = vpop.permute.xlu0 %900
    %v903 = vadd.f32 %v893, %v901
    %v904 = vtanh.pop %v903
    %906 = vrot.lane.b32.xlu0 %v904, 64
    %v907 = vpop.permute.xlu0 %906
    %v909 = vmul.f32 %v891, %v907
    %911 = vrot.lane.b32.xlu0 %v909, 32
    %v912 = vpop.permute.xlu0 %911
    %914 = vst.msk [vmem:[#allocation3 + $0x30] sm:$0xff] %vm193, %v912
    %v915 = vld [vmem:[#allocation2 + $0x38] sm:$0xff]
    %v916 = vsel %vm193, %v912, 0
    %918 = vmatprep.subr.mxu0 0.0
    %919 = vmatpush1.msra.mxu0 %v188
    %920 = vmatprep.subr.mxu0 0.0
    %921 = vmatpush1.msra.mxu0 %v189
    %922 = vmatprep.subr.mxu0 0.0
    %923 = vmatpush1.msra.mxu0 %v190
    %924 = vmatprep.subr.mxu0 0.0
    %925 = vmatpush1.msra.mxu0 %v191
    %926 = vmatprep.subr.mxu0 0.0
    %927 = vmatpush1.msra.mxu0 0.0
    %928 = vmatprep.subr.mxu0 0.0
    %929 = vmatpush1.msra.mxu0 0.0
    %930 = vmatprep.subr.mxu0 0.0
    %931 = vmatpush1.msra.mxu0 0.0
    %932 = vmatprep.subr.mxu0 0.0
    %933 = vmatpush1.msra.mxu0 0.0
    %934 = vmatprep.subr.mxu0 0.0
    %935 = vmatpush1.msra.mxu0 0.0
    %936 = vmatprep.subr.mxu0 0.0
    %937 = vmatpush1.msra.mxu0 0.0
    %938 = vmatprep.subr.mxu0 0.0
    %939 = vmatpush1.msra.mxu0 0.0
    %940 = vmatprep.subr.mxu0 0.0
    %941 = vmatpush1.msra.mxu0 0.0
    %942 = vmatprep.subr.mxu0 0.0
    %943 = vmatpush1.msra.mxu0 0.0
    %944 = vmatprep.subr.mxu0 0.0
    %945 = vmatpush1.msra.mxu0 0.0
    %946 = vmatprep.subr.mxu0 0.0
    %947 = vmatpush1.msra.mxu0 0.0
    %948 = vmatprep.subr.mxu0 0.0
    %949 = vmatpush1.msra.mxu0 0.0
    %950 = vmatprep.subr.mxu0 0.0
    %951 = vmatpush1.msra.mxu0 0.0
    %952 = vmatprep.subr.mxu0 0.0
    %953 = vmatpush1.msra.mxu0 0.0
    %954 = vmatprep.subr.mxu0 0.0
    %955 = vmatpush1.msra.mxu0 0.0
    %956 = vmatprep.subr.mxu0 0.0
    %957 = vmatpush1.msra.mxu0 0.0
    %958 = vmatprep.subr.mxu0 0.0
    %959 = vmatpush1.msra.mxu0 0.0
    %960 = vmatprep.subr.mxu0 0.0
    %961 = vmatpush1.msra.mxu0 0.0
    %962 = vmatprep.subr.mxu0 0.0
    %963 = vmatpush1.msra.mxu0 0.0
    %964 = vmatprep.subr.mxu0 0.0
    %965 = vmatpush1.msra.mxu0 0.0
    %966 = vmatprep.subr.mxu0 0.0
    %967 = vmatpush1.msra.mxu0 0.0
    %968 = vmatprep.subr.mxu0 0.0
    %969 = vmatpush1.msra.mxu0 0.0
    %970 = vmatprep.subr.mxu0 0.0
    %971 = vmatpush1.msra.mxu0 0.0
    %972 = vmatprep.subr.mxu0 0.0
    %973 = vmatpush1.msra.mxu0 0.0
    %974 = vmatprep.subr.mxu0 0.0
    %975 = vmatpush1.msra.mxu0 0.0
    %976 = vmatprep.subr.mxu0 0.0
    %977 = vmatpush1.msra.mxu0 0.0
    %978 = vmatprep.subr.mxu0 0.0
    %979 = vmatpush1.msra.mxu0 0.0
    %980 = vmatprep.subr.mxu0 0.0
    %981 = vmatpush1.msra.mxu0 0.0
    %982 = vmatprep.mubr.f32.mxu0 0.0
    %983 = vmatmul.mubr.f32.gmra.mrb[0].mxu0 %v916
    %v984 = vpop.f32.mrb[0].mxu0
    %v985 = vadd.f32 0.0, %v984
    %v986 = vpop.f32.mrb[0].mxu0
    %987 = vdwg.mxu0
    %v988 = vadd.f32 %v915, %v985
    %v989 = vxor.u32 %v988, 2147483648
    %v990 = vmul.f32 %v989, 1.442695
    %v991 = vpow.pop %v990
    %v992 = vadd.f32 %v991, 1.0
    %v993 = vrcp.pop %v992
    %v994 = vmul.f32 1.0, %v993
    %v995 = vtanh.pop %v988
    %v996 = vmul.f32 %v994, %v903
    %998 = vrot.lane.b32.xlu0 %v995, 64
    %v999 = vpop.permute.xlu0 %998
    %v1001 = vmul.f32 %v994, %v999
    %1003 = vrot.lane.b32.xlu0 %v1001, 32
    %v1004 = vpop.permute.xlu0 %1003
    %v1006 = vadd.f32 %v996, %v1004
    %v1007 = vtanh.pop %v1006
    %1009 = vrot.lane.b32.xlu0 %v1007, 64
    %v1010 = vpop.permute.xlu0 %1009
    %v1012 = vmul.f32 %v994, %v1010
    %1014 = vrot.lane.b32.xlu0 %v1012, 32
    %v1015 = vpop.permute.xlu0 %1014
    %1017 = vst.msk [vmem:[#allocation3 + $0x38] sm:$0xff] %vm193, %v1015
    %v1018 = vld [vmem:[#allocation3] sm:$0xff]
    %v1019 = vld [vmem:[#allocation3 + $0x8] sm:$0xff]
    %v1020 = vld [vmem:[#allocation3 + $0x10] sm:$0xff]
    %v1021 = vld [vmem:[#allocation3 + $0x18] sm:$0xff]
    %v1022 = vld [vmem:[#allocation3 + $0x20] sm:$0xff]
    %v1023 = vld [vmem:[#allocation3 + $0x28] sm:$0xff]
    %v1024 = vld [vmem:[#allocation3 + $0x30] sm:$0xff]
    %v1025 = vld [vmem:[#allocation3 + $0x38] sm:$0xff]
    %v1026 = vld [vmem:[%s4] sm:$0xff]
    %v1027 = vld [vmem:[%s4 + $0x8] sm:$0xff]
    %v1028 = vld [vmem:[%s4 + $0x10] sm:$0xff]
    %v1029 = vld [vmem:[%s4 + $0x18] sm:$0xff]
    %v1030 = vld [vmem:[%s6] sm:$0x1]
    %v1032 = vlaneseq
    %v1033 = vshrl.u32 %v1032, 7
    %v1034 = vsub.s32 0, %v1033
    %v1035 = vrot.slane %v1030, %v1034
    %v1038 = vsel %vm193, %v1018, 0
    %v1041 = vsel %vm193, %v1019, 0
    %v1044 = vsel %vm193, %v1020, 0
    %v1047 = vsel %vm193, %v1021, 0
    %v1050 = vsel %vm193, %v1022, 0
    %v1053 = vsel %vm193, %v1023, 0
    %v1056 = vsel %vm193, %v1024, 0
    %v1059 = vsel %vm193, %v1025, 0
    %1061 = vmatprep.subr.mxu0 0.0
    %1062 = vmatpush1.msra.mxu0 %v1026
    %1063 = vmatprep.subr.mxu0 0.0
    %1064 = vmatpush1.msra.mxu0 %v1027
    %1065 = vmatprep.subr.mxu0 0.0
    %1066 = vmatpush1.msra.mxu0 %v1028
    %1067 = vmatprep.subr.mxu0 0.0
    %1068 = vmatpush1.msra.mxu0 %v1029
    %1069 = vmatprep.subr.mxu0 0.0
    %1070 = vmatpush1.msra.mxu0 0.0
    %1071 = vmatprep.subr.mxu0 0.0
    %1072 = vmatpush1.msra.mxu0 0.0
    %1073 = vmatprep.subr.mxu0 0.0
    %1074 = vmatpush1.msra.mxu0 0.0
    %1075 = vmatprep.subr.mxu0 0.0
    %1076 = vmatpush1.msra.mxu0 0.0
    %1077 = vmatprep.subr.mxu0 0.0
    %1078 = vmatpush1.msra.mxu0 0.0
    %1079 = vmatprep.subr.mxu0 0.0
    %1080 = vmatpush1.msra.mxu0 0.0
    %1081 = vmatprep.subr.mxu0 0.0
    %1082 = vmatpush1.msra.mxu0 0.0
    %1083 = vmatprep.subr.mxu0 0.0
    %1084 = vmatpush1.msra.mxu0 0.0
    %1085 = vmatprep.subr.mxu0 0.0
    %1086 = vmatpush1.msra.mxu0 0.0
    %1087 = vmatprep.subr.mxu0 0.0
    %1088 = vmatpush1.msra.mxu0 0.0
    %1089 = vmatprep.subr.mxu0 0.0
    %1090 = vmatpush1.msra.mxu0 0.0
    %1091 = vmatprep.subr.mxu0 0.0
    %1092 = vmatpush1.msra.mxu0 0.0
    %1093 = vmatprep.subr.mxu0 0.0
    %1094 = vmatpush1.msra.mxu0 0.0
    %1095 = vmatprep.subr.mxu0 0.0
    %1096 = vmatpush1.msra.mxu0 0.0
    %1097 = vmatprep.subr.mxu0 0.0
    %1098 = vmatpush1.msra.mxu0 0.0
    %1099 = vmatprep.subr.mxu0 0.0
    %1100 = vmatpush1.msra.mxu0 0.0
    %1101 = vmatprep.subr.mxu0 0.0
    %1102 = vmatpush1.msra.mxu0 0.0
    %1103 = vmatprep.subr.mxu0 0.0
    %1104 = vmatpush1.msra.mxu0 0.0
    %1105 = vmatprep.subr.mxu0 0.0
    %1106 = vmatpush1.msra.mxu0 0.0
    %1107 = vmatprep.subr.mxu0 0.0
    %1108 = vmatpush1.msra.mxu0 0.0
    %1109 = vmatprep.subr.mxu0 0.0
    %1110 = vmatpush1.msra.mxu0 0.0
    %1111 = vmatprep.subr.mxu0 0.0
    %1112 = vmatpush1.msra.mxu0 0.0
    %1113 = vmatprep.subr.mxu0 0.0
    %1114 = vmatpush1.msra.mxu0 0.0
    %1115 = vmatprep.subr.mxu0 0.0
    %1116 = vmatpush1.msra.mxu0 0.0
    %1117 = vmatprep.subr.mxu0 0.0
    %1118 = vmatpush1.msra.mxu0 0.0
    %1119 = vmatprep.subr.mxu0 0.0
    %1120 = vmatpush1.msra.mxu0 0.0
    %1121 = vmatprep.subr.mxu0 0.0
    %1122 = vmatpush1.msra.mxu0 0.0
    %1123 = vmatprep.subr.mxu0 0.0
    %1124 = vmatpush1.msra.mxu0 0.0
    %1125 = vmatprep.mubr.f32.mxu0 0.0
    %1126 = vmatmul.mubr.f32.gmra.mrb[0].mxu0 %v1038
    %v1127 = vpop.f32.mrb[0].mxu0
    %v1128 = vadd.f32 %v1035, %v1127
    %v1129 = vpop.f32.mrb[0].mxu0
    %1130 = vmatprep.mubr.f32.mxu0 0.0
    %1131 = vmatmul.mubr.f32.gmra.mrb[0].mxu0 %v1041
    %v1132 = vpop.f32.mrb[0].mxu0
    %v1133 = vadd.f32 %v1035, %v1132
    %v1134 = vpop.f32.mrb[0].mxu0
    %1135 = vmatprep.mubr.f32.mxu0 0.0
    %1136 = vmatmul.mubr.f32.gmra.mrb[0].mxu0 %v1044
    %v1137 = vpop.f32.mrb[0].mxu0
    %v1138 = vadd.f32 %v1035, %v1137
    %v1139 = vpop.f32.mrb[0].mxu0
    %1140 = vmatprep.mubr.f32.mxu0 0.0
    %1141 = vmatmul.mubr.f32.gmra.mrb[0].mxu0 %v1047
    %v1142 = vpop.f32.mrb[0].mxu0
    %v1143 = vadd.f32 %v1035, %v1142
    %v1144 = vpop.f32.mrb[0].mxu0
    %1145 = vmatprep.mubr.f32.mxu0 0.0
    %1146 = vmatmul.mubr.f32.gmra.mrb[0].mxu0 %v1050
    %v1147 = vpop.f32.mrb[0].mxu0
    %v1148 = vadd.f32 %v1035, %v1147
    %v1149 = vpop.f32.mrb[0].mxu0
    %1150 = vmatprep.mubr.f32.mxu0 0.0
    %1151 = vmatmul.mubr.f32.gmra.mrb[0].mxu0 %v1053
    %v1152 = vpop.f32.mrb[0].mxu0
    %v1153 = vadd.f32 %v1035, %v1152
    %v1154 = vpop.f32.mrb[0].mxu0
    %1155 = vmatprep.mubr.f32.mxu0 0.0
    %1156 = vmatmul.mubr.f32.gmra.mrb[0].mxu0 %v1056
    %v1157 = vpop.f32.mrb[0].mxu0
    %v1158 = vadd.f32 %v1035, %v1157
    %v1159 = vpop.f32.mrb[0].mxu0
    %1160 = vmatprep.mubr.f32.mxu0 0.0
    %1161 = vmatmul.mubr.f32.gmra.mrb[0].mxu0 %v1059
    %v1162 = vpop.f32.mrb[0].mxu0
    %v1163 = vadd.f32 %v1035, %v1162
    %v1164 = vpop.f32.mrb[0].mxu0
    %1165 = vdwg.mxu0
    %1166 = vst [vmem:[#allocation2] sm:$0xff] %v1128
    %1167 = vst [vmem:[#allocation2 + $0x8] sm:$0xff] %v1133
    %1168 = vst [vmem:[#allocation2 + $0x10] sm:$0xff] %v1138
    %1169 = vst [vmem:[#allocation2 + $0x18] sm:$0xff] %v1143
    %1170 = vst [vmem:[#allocation2 + $0x20] sm:$0xff] %v1148
    %1171 = vst [vmem:[#allocation2 + $0x28] sm:$0xff] %v1153
    %1172 = vst [vmem:[#allocation2 + $0x30] sm:$0xff] %v1158
    %1173 = vst [vmem:[#allocation2 + $0x38] sm:$0xff] %v1163
    %v1174 = vld [vmem:[%s5] sm:$0xff]
    %v1175 = vld [vmem:[%s5 + $0x8] sm:$0xff]
    %v1176 = vld [vmem:[%s5 + $0x10] sm:$0xff]
    %v1177 = vld [vmem:[%s5 + $0x18] sm:$0xff]
    %v1178 = vld [vmem:[#allocation2] sm:$0xff]
    %1179 = vmatprep.subr.mxu0 0.0
    %1180 = vmatpush1.msra.mxu0 %v1174
    %1181 = vmatprep.subr.mxu0 0.0
    %1182 = vmatpush1.msra.mxu0 %v1175
    %1183 = vmatprep.subr.mxu0 0.0
    %1184 = vmatpush1.msra.mxu0 %v1176
    %1185 = vmatprep.subr.mxu0 0.0
    %1186 = vmatpush1.msra.mxu0 %v1177
    %1187 = vmatprep.subr.mxu0 0.0
    %1188 = vmatpush1.msra.mxu0 0.0
    %1189 = vmatprep.subr.mxu0 0.0
    %1190 = vmatpush1.msra.mxu0 0.0
    %1191 = vmatprep.subr.mxu0 0.0
    %1192 = vmatpush1.msra.mxu0 0.0
    %1193 = vmatprep.subr.mxu0 0.0
    %1194 = vmatpush1.msra.mxu0 0.0
    %1195 = vmatprep.subr.mxu0 0.0
    %1196 = vmatpush1.msra.mxu0 0.0
    %1197 = vmatprep.subr.mxu0 0.0
    %1198 = vmatpush1.msra.mxu0 0.0
    %1199 = vmatprep.subr.mxu0 0.0
    %1200 = vmatpush1.msra.mxu0 0.0
    %1201 = vmatprep.subr.mxu0 0.0
    %1202 = vmatpush1.msra.mxu0 0.0
    %1203 = vmatprep.subr.mxu0 0.0
    %1204 = vmatpush1.msra.mxu0 0.0
    %1205 = vmatprep.subr.mxu0 0.0
    %1206 = vmatpush1.msra.mxu0 0.0
    %1207 = vmatprep.subr.mxu0 0.0
    %1208 = vmatpush1.msra.mxu0 0.0
    %1209 = vmatprep.subr.mxu0 0.0
    %1210 = vmatpush1.msra.mxu0 0.0
    %1211 = vmatprep.subr.mxu0 0.0
    %1212 = vmatpush1.msra.mxu0 0.0
    %1213 = vmatprep.subr.mxu0 0.0
    %1214 = vmatpush1.msra.mxu0 0.0
    %1215 = vmatprep.subr.mxu0 0.0
    %1216 = vmatpush1.msra.mxu0 0.0
    %1217 = vmatprep.subr.mxu0 0.0
    %1218 = vmatpush1.msra.mxu0 0.0
    %1219 = vmatprep.subr.mxu0 0.0
    %1220 = vmatpush1.msra.mxu0 0.0
    %1221 = vmatprep.subr.mxu0 0.0
    %1222 = vmatpush1.msra.mxu0 0.0
    %1223 = vmatprep.subr.mxu0 0.0
    %1224 = vmatpush1.msra.mxu0 0.0
    %1225 = vmatprep.subr.mxu0 0.0
    %1226 = vmatpush1.msra.mxu0 0.0
    %1227 = vmatprep.subr.mxu0 0.0
    %1228 = vmatpush1.msra.mxu0 0.0
    %1229 = vmatprep.subr.mxu0 0.0
    %1230 = vmatpush1.msra.mxu0 0.0
    %1231 = vmatprep.subr.mxu0 0.0
    %1232 = vmatpush1.msra.mxu0 0.0
    %1233 = vmatprep.subr.mxu0 0.0
    %1234 = vmatpush1.msra.mxu0 0.0
    %1235 = vmatprep.subr.mxu0 0.0
    %1236 = vmatpush1.msra.mxu0 0.0
    %1237 = vmatprep.subr.mxu0 0.0
    %1238 = vmatpush1.msra.mxu0 0.0
    %1239 = vmatprep.subr.mxu0 0.0
    %1240 = vmatpush1.msra.mxu0 0.0
    %1241 = vmatprep.subr.mxu0 0.0
    %1242 = vmatpush1.msra.mxu0 0.0
    %1243 = vmatprep.mubr.f32.mxu0 0.0
    %1244 = vmatmul.mubr.f32.gmra.mrb[0].mxu0 %v195
    %v1245 = vpop.f32.mrb[0].mxu0
    %v1246 = vadd.f32 0.0, %v1245
    %v1247 = vpop.f32.mrb[0].mxu0
    %1248 = vdwg.mxu0
    %v1249 = vadd.f32 %v1178, %v1246
    %v1250 = vxor.u32 %v1249, 2147483648
    %v1251 = vmul.f32 %v1250, 1.442695
    %v1252 = vpow.pop %v1251
    %v1253 = vadd.f32 %v1252, 1.0
    %v1254 = vrcp.pop %v1253
    %v1255 = vmul.f32 1.0, %v1254
    %v1256 = vtanh.pop %v1249
    %v1257 = vmul.f32 %v1255, 0.0
    %1259 = vrot.lane.b32.xlu0 %v1256, 64
    %v1260 = vpop.permute.xlu0 %1259
    %v1262 = vmul.f32 %v1255, %v1260
    %1264 = vrot.lane.b32.xlu0 %v1262, 32
    %v1265 = vpop.permute.xlu0 %1264
    %v1267 = vadd.f32 %v1257, %v1265
    %v1268 = vtanh.pop %v1267
    %1270 = vrot.lane.b32.xlu0 %v1268, 64
    %v1271 = vpop.permute.xlu0 %1270
    %v1273 = vmul.f32 %v1255, %v1271
    %v1274 = vld [vmem:[#allocation2 + $0x8] sm:$0xff]
    %1276 = vrot.lane.b32.xlu0 %v1273, 32
    %v1277 = vpop.permute.xlu0 %1276
    %v1278 = vsel %vm193, %v1277, 0
    %1280 = vmatprep.subr.mxu0 0.0
    %1281 = vmatpush1.msra.mxu0 %v1174
    %1282 = vmatprep.subr.mxu0 0.0
    %1283 = vmatpush1.msra.mxu0 %v1175
    %1284 = vmatprep.subr.mxu0 0.0
    %1285 = vmatpush1.msra.mxu0 %v1176
    %1286 = vmatprep.subr.mxu0 0.0
    %1287 = vmatpush1.msra.mxu0 %v1177
    %1288 = vmatprep.subr.mxu0 0.0
    %1289 = vmatpush1.msra.mxu0 0.0
    %1290 = vmatprep.subr.mxu0 0.0
    %1291 = vmatpush1.msra.mxu0 0.0
    %1292 = vmatprep.subr.mxu0 0.0
    %1293 = vmatpush1.msra.mxu0 0.0
    %1294 = vmatprep.subr.mxu0 0.0
    %1295 = vmatpush1.msra.mxu0 0.0
    %1296 = vmatprep.subr.mxu0 0.0
    %1297 = vmatpush1.msra.mxu0 0.0
    %1298 = vmatprep.subr.mxu0 0.0
    %1299 = vmatpush1.msra.mxu0 0.0
    %1300 = vmatprep.subr.mxu0 0.0
    %1301 = vmatpush1.msra.mxu0 0.0
    %1302 = vmatprep.subr.mxu0 0.0
    %1303 = vmatpush1.msra.mxu0 0.0
    %1304 = vmatprep.subr.mxu0 0.0
    %1305 = vmatpush1.msra.mxu0 0.0
    %1306 = vmatprep.subr.mxu0 0.0
    %1307 = vmatpush1.msra.mxu0 0.0
    %1308 = vmatprep.subr.mxu0 0.0
    %1309 = vmatpush1.msra.mxu0 0.0
    %1310 = vmatprep.subr.mxu0 0.0
    %1311 = vmatpush1.msra.mxu0 0.0
    %1312 = vmatprep.subr.mxu0 0.0
    %1313 = vmatpush1.msra.mxu0 0.0
    %1314 = vmatprep.subr.mxu0 0.0
    %1315 = vmatpush1.msra.mxu0 0.0
    %1316 = vmatprep.subr.mxu0 0.0
    %1317 = vmatpush1.msra.mxu0 0.0
    %1318 = vmatprep.subr.mxu0 0.0
    %1319 = vmatpush1.msra.mxu0 0.0
    %1320 = vmatprep.subr.mxu0 0.0
    %1321 = vmatpush1.msra.mxu0 0.0
    %1322 = vmatprep.subr.mxu0 0.0
    %1323 = vmatpush1.msra.mxu0 0.0
    %1324 = vmatprep.subr.mxu0 0.0
    %1325 = vmatpush1.msra.mxu0 0.0
    %1326 = vmatprep.subr.mxu0 0.0
    %1327 = vmatpush1.msra.mxu0 0.0
    %1328 = vmatprep.subr.mxu0 0.0
    %1329 = vmatpush1.msra.mxu0 0.0
    %1330 = vmatprep.subr.mxu0 0.0
    %1331 = vmatpush1.msra.mxu0 0.0
    %1332 = vmatprep.subr.mxu0 0.0
    %1333 = vmatpush1.msra.mxu0 0.0
    %1334 = vmatprep.subr.mxu0 0.0
    %1335 = vmatpush1.msra.mxu0 0.0
    %1336 = vmatprep.subr.mxu0 0.0
    %1337 = vmatpush1.msra.mxu0 0.0
    %1338 = vmatprep.subr.mxu0 0.0
    %1339 = vmatpush1.msra.mxu0 0.0
    %1340 = vmatprep.subr.mxu0 0.0
    %1341 = vmatpush1.msra.mxu0 0.0
    %1342 = vmatprep.subr.mxu0 0.0
    %1343 = vmatpush1.msra.mxu0 0.0
    %1344 = vmatprep.mubr.f32.mxu0 0.0
    %1345 = vmatmul.mubr.f32.gmra.mrb[0].mxu0 %v1278
    %v1346 = vpop.f32.mrb[0].mxu0
    %v1347 = vadd.f32 0.0, %v1346
    %v1348 = vpop.f32.mrb[0].mxu0
    %1349 = vdwg.mxu0
    %v1350 = vadd.f32 %v1274, %v1347
    %v1351 = vxor.u32 %v1350, 2147483648
    %v1352 = vmul.f32 %v1351, 1.442695
    %v1353 = vpow.pop %v1352
    %v1354 = vadd.f32 %v1353, 1.0
    %v1355 = vrcp.pop %v1354
    %v1356 = vmul.f32 1.0, %v1355
    %v1357 = vtanh.pop %v1350
    %v1358 = vmul.f32 %v1356, %v1267
    %1360 = vrot.lane.b32.xlu0 %v1357, 64
    %v1361 = vpop.permute.xlu0 %1360
    %v1363 = vmul.f32 %v1356, %v1361
    %1365 = vrot.lane.b32.xlu0 %v1363, 32
    %v1366 = vpop.permute.xlu0 %1365
    %v1368 = vadd.f32 %v1358, %v1366
    %v1369 = vtanh.pop %v1368
    %1371 = vrot.lane.b32.xlu0 %v1369, 64
    %v1372 = vpop.permute.xlu0 %1371
    %v1374 = vmul.f32 %v1356, %v1372
    %v1375 = vld [vmem:[#allocation2 + $0x10] sm:$0xff]
    %1377 = vrot.lane.b32.xlu0 %v1374, 32
    %v1378 = vpop.permute.xlu0 %1377
    %v1379 = vsel %vm193, %v1378, 0
    %1381 = vmatprep.subr.mxu0 0.0
    %1382 = vmatpush1.msra.mxu0 %v1174
    %1383 = vmatprep.subr.mxu0 0.0
    %1384 = vmatpush1.msra.mxu0 %v1175
    %1385 = vmatprep.subr.mxu0 0.0
    %1386 = vmatpush1.msra.mxu0 %v1176
    %1387 = vmatprep.subr.mxu0 0.0
    %1388 = vmatpush1.msra.mxu0 %v1177
    %1389 = vmatprep.subr.mxu0 0.0
    %1390 = vmatpush1.msra.mxu0 0.0
    %1391 = vmatprep.subr.mxu0 0.0
    %1392 = vmatpush1.msra.mxu0 0.0
    %1393 = vmatprep.subr.mxu0 0.0
    %1394 = vmatpush1.msra.mxu0 0.0
    %1395 = vmatprep.subr.mxu0 0.0
    %1396 = vmatpush1.msra.mxu0 0.0
    %1397 = vmatprep.subr.mxu0 0.0
    %1398 = vmatpush1.msra.mxu0 0.0
    %1399 = vmatprep.subr.mxu0 0.0
    %1400 = vmatpush1.msra.mxu0 0.0
    %1401 = vmatprep.subr.mxu0 0.0
    %1402 = vmatpush1.msra.mxu0 0.0
    %1403 = vmatprep.subr.mxu0 0.0
    %1404 = vmatpush1.msra.mxu0 0.0
    %1405 = vmatprep.subr.mxu0 0.0
    %1406 = vmatpush1.msra.mxu0 0.0
    %1407 = vmatprep.subr.mxu0 0.0
    %1408 = vmatpush1.msra.mxu0 0.0
    %1409 = vmatprep.subr.mxu0 0.0
    %1410 = vmatpush1.msra.mxu0 0.0
    %1411 = vmatprep.subr.mxu0 0.0
    %1412 = vmatpush1.msra.mxu0 0.0
    %1413 = vmatprep.subr.mxu0 0.0
    %1414 = vmatpush1.msra.mxu0 0.0
    %1415 = vmatprep.subr.mxu0 0.0
    %1416 = vmatpush1.msra.mxu0 0.0
    %1417 = vmatprep.subr.mxu0 0.0
    %1418 = vmatpush1.msra.mxu0 0.0
    %1419 = vmatprep.subr.mxu0 0.0
    %1420 = vmatpush1.msra.mxu0 0.0
    %1421 = vmatprep.subr.mxu0 0.0
    %1422 = vmatpush1.msra.mxu0 0.0
    %1423 = vmatprep.subr.mxu0 0.0
    %1424 = vmatpush1.msra.mxu0 0.0
    %1425 = vmatprep.subr.mxu0 0.0
    %1426 = vmatpush1.msra.mxu0 0.0
    %1427 = vmatprep.subr.mxu0 0.0
    %1428 = vmatpush1.msra.mxu0 0.0
    %1429 = vmatprep.subr.mxu0 0.0
    %1430 = vmatpush1.msra.mxu0 0.0
    %1431 = vmatprep.subr.mxu0 0.0
    %1432 = vmatpush1.msra.mxu0 0.0
    %1433 = vmatprep.subr.mxu0 0.0
    %1434 = vmatpush1.msra.mxu0 0.0
    %1435 = vmatprep.subr.mxu0 0.0
    %1436 = vmatpush1.msra.mxu0 0.0
    %1437 = vmatprep.subr.mxu0 0.0
    %1438 = vmatpush1.msra.mxu0 0.0
    %1439 = vmatprep.subr.mxu0 0.0
    %1440 = vmatpush1.msra.mxu0 0.0
    %1441 = vmatprep.subr.mxu0 0.0
    %1442 = vmatpush1.msra.mxu0 0.0
    %1443 = vmatprep.subr.mxu0 0.0
    %1444 = vmatpush1.msra.mxu0 0.0
    %1445 = vmatprep.mubr.f32.mxu0 0.0
    %1446 = vmatmul.mubr.f32.gmra.mrb[0].mxu0 %v1379
    %v1447 = vpop.f32.mrb[0].mxu0
    %v1448 = vadd.f32 0.0, %v1447
    %v1449 = vpop.f32.mrb[0].mxu0
    %1450 = vdwg.mxu0
    %v1451 = vadd.f32 %v1375, %v1448
    %v1452 = vxor.u32 %v1451, 2147483648
    %v1453 = vmul.f32 %v1452, 1.442695
    %v1454 = vpow.pop %v1453
    %v1455 = vadd.f32 %v1454, 1.0
    %v1456 = vrcp.pop %v1455
    %v1457 = vmul.f32 1.0, %v1456
    %v1458 = vtanh.pop %v1451
    %v1459 = vmul.f32 %v1457, %v1368
    %1461 = vrot.lane.b32.xlu0 %v1458, 64
    %v1462 = vpop.permute.xlu0 %1461
    %v1464 = vmul.f32 %v1457, %v1462
    %1466 = vrot.lane.b32.xlu0 %v1464, 32
    %v1467 = vpop.permute.xlu0 %1466
    %v1469 = vadd.f32 %v1459, %v1467
    %v1470 = vtanh.pop %v1469
    %1472 = vrot.lane.b32.xlu0 %v1470, 64
    %v1473 = vpop.permute.xlu0 %1472
    %v1475 = vmul.f32 %v1457, %v1473
    %v1476 = vld [vmem:[#allocation2 + $0x18] sm:$0xff]
    %1478 = vrot.lane.b32.xlu0 %v1475, 32
    %v1479 = vpop.permute.xlu0 %1478
    %v1480 = vsel %vm193, %v1479, 0
    %1482 = vmatprep.subr.mxu0 0.0
    %1483 = vmatpush1.msra.mxu0 %v1174
    %1484 = vmatprep.subr.mxu0 0.0
    %1485 = vmatpush1.msra.mxu0 %v1175
    %1486 = vmatprep.subr.mxu0 0.0
    %1487 = vmatpush1.msra.mxu0 %v1176
    %1488 = vmatprep.subr.mxu0 0.0
    %1489 = vmatpush1.msra.mxu0 %v1177
    %1490 = vmatprep.subr.mxu0 0.0
    %1491 = vmatpush1.msra.mxu0 0.0
    %1492 = vmatprep.subr.mxu0 0.0
    %1493 = vmatpush1.msra.mxu0 0.0
    %1494 = vmatprep.subr.mxu0 0.0
    %1495 = vmatpush1.msra.mxu0 0.0
    %1496 = vmatprep.subr.mxu0 0.0
    %1497 = vmatpush1.msra.mxu0 0.0
    %1498 = vmatprep.subr.mxu0 0.0
    %1499 = vmatpush1.msra.mxu0 0.0
    %1500 = vmatprep.subr.mxu0 0.0
    %1501 = vmatpush1.msra.mxu0 0.0
    %1502 = vmatprep.subr.mxu0 0.0
    %1503 = vmatpush1.msra.mxu0 0.0
    %1504 = vmatprep.subr.mxu0 0.0
    %1505 = vmatpush1.msra.mxu0 0.0
    %1506 = vmatprep.subr.mxu0 0.0
    %1507 = vmatpush1.msra.mxu0 0.0
    %1508 = vmatprep.subr.mxu0 0.0
    %1509 = vmatpush1.msra.mxu0 0.0
    %1510 = vmatprep.subr.mxu0 0.0
    %1511 = vmatpush1.msra.mxu0 0.0
    %1512 = vmatprep.subr.mxu0 0.0
    %1513 = vmatpush1.msra.mxu0 0.0
    %1514 = vmatprep.subr.mxu0 0.0
    %1515 = vmatpush1.msra.mxu0 0.0
    %1516 = vmatprep.subr.mxu0 0.0
    %1517 = vmatpush1.msra.mxu0 0.0
    %1518 = vmatprep.subr.mxu0 0.0
    %1519 = vmatpush1.msra.mxu0 0.0
    %1520 = vmatprep.subr.mxu0 0.0
    %1521 = vmatpush1.msra.mxu0 0.0
    %1522 = vmatprep.subr.mxu0 0.0
    %1523 = vmatpush1.msra.mxu0 0.0
    %1524 = vmatprep.subr.mxu0 0.0
    %1525 = vmatpush1.msra.mxu0 0.0
    %1526 = vmatprep.subr.mxu0 0.0
    %1527 = vmatpush1.msra.mxu0 0.0
    %1528 = vmatprep.subr.mxu0 0.0
    %1529 = vmatpush1.msra.mxu0 0.0
    %1530 = vmatprep.subr.mxu0 0.0
    %1531 = vmatpush1.msra.mxu0 0.0
    %1532 = vmatprep.subr.mxu0 0.0
    %1533 = vmatpush1.msra.mxu0 0.0
    %1534 = vmatprep.subr.mxu0 0.0
    %1535 = vmatpush1.msra.mxu0 0.0
    %1536 = vmatprep.subr.mxu0 0.0
    %1537 = vmatpush1.msra.mxu0 0.0
    %1538 = vmatprep.subr.mxu0 0.0
    %1539 = vmatpush1.msra.mxu0 0.0
    %1540 = vmatprep.subr.mxu0 0.0
    %1541 = vmatpush1.msra.mxu0 0.0
    %1542 = vmatprep.subr.mxu0 0.0
    %1543 = vmatpush1.msra.mxu0 0.0
    %1544 = vmatprep.subr.mxu0 0.0
    %1545 = vmatpush1.msra.mxu0 0.0
    %1546 = vmatprep.mubr.f32.mxu0 0.0
    %1547 = vmatmul.mubr.f32.gmra.mrb[0].mxu0 %v1480
    %v1548 = vpop.f32.mrb[0].mxu0
    %v1549 = vadd.f32 0.0, %v1548
    %v1550 = vpop.f32.mrb[0].mxu0
    %1551 = vdwg.mxu0
    %v1552 = vadd.f32 %v1476, %v1549
    %v1553 = vxor.u32 %v1552, 2147483648
    %v1554 = vmul.f32 %v1553, 1.442695
    %v1555 = vpow.pop %v1554
    %v1556 = vadd.f32 %v1555, 1.0
    %v1557 = vrcp.pop %v1556
    %v1558 = vmul.f32 1.0, %v1557
    %v1559 = vtanh.pop %v1552
    %v1560 = vmul.f32 %v1558, %v1469
    %1562 = vrot.lane.b32.xlu0 %v1559, 64
    %v1563 = vpop.permute.xlu0 %1562
    %v1565 = vmul.f32 %v1558, %v1563
    %1567 = vrot.lane.b32.xlu0 %v1565, 32
    %v1568 = vpop.permute.xlu0 %1567
    %v1570 = vadd.f32 %v1560, %v1568
    %v1571 = vtanh.pop %v1570
    %1573 = vrot.lane.b32.xlu0 %v1571, 64
    %v1574 = vpop.permute.xlu0 %1573
    %v1576 = vmul.f32 %v1558, %v1574
    %v1577 = vld [vmem:[#allocation2 + $0x20] sm:$0xff]
    %1579 = vrot.lane.b32.xlu0 %v1576, 32
    %v1580 = vpop.permute.xlu0 %1579
    %v1581 = vsel %vm193, %v1580, 0
    %1583 = vmatprep.subr.mxu0 0.0
    %1584 = vmatpush1.msra.mxu0 %v1174
    %1585 = vmatprep.subr.mxu0 0.0
    %1586 = vmatpush1.msra.mxu0 %v1175
    %1587 = vmatprep.subr.mxu0 0.0
    %1588 = vmatpush1.msra.mxu0 %v1176
    %1589 = vmatprep.subr.mxu0 0.0
    %1590 = vmatpush1.msra.mxu0 %v1177
    %1591 = vmatprep.subr.mxu0 0.0
    %1592 = vmatpush1.msra.mxu0 0.0
    %1593 = vmatprep.subr.mxu0 0.0
    %1594 = vmatpush1.msra.mxu0 0.0
    %1595 = vmatprep.subr.mxu0 0.0
    %1596 = vmatpush1.msra.mxu0 0.0
    %1597 = vmatprep.subr.mxu0 0.0
    %1598 = vmatpush1.msra.mxu0 0.0
    %1599 = vmatprep.subr.mxu0 0.0
    %1600 = vmatpush1.msra.mxu0 0.0
    %1601 = vmatprep.subr.mxu0 0.0
    %1602 = vmatpush1.msra.mxu0 0.0
    %1603 = vmatprep.subr.mxu0 0.0
    %1604 = vmatpush1.msra.mxu0 0.0
    %1605 = vmatprep.subr.mxu0 0.0
    %1606 = vmatpush1.msra.mxu0 0.0
    %1607 = vmatprep.subr.mxu0 0.0
    %1608 = vmatpush1.msra.mxu0 0.0
    %1609 = vmatprep.subr.mxu0 0.0
    %1610 = vmatpush1.msra.mxu0 0.0
    %1611 = vmatprep.subr.mxu0 0.0
    %1612 = vmatpush1.msra.mxu0 0.0
    %1613 = vmatprep.subr.mxu0 0.0
    %1614 = vmatpush1.msra.mxu0 0.0
    %1615 = vmatprep.subr.mxu0 0.0
    %1616 = vmatpush1.msra.mxu0 0.0
    %1617 = vmatprep.subr.mxu0 0.0
    %1618 = vmatpush1.msra.mxu0 0.0
    %1619 = vmatprep.subr.mxu0 0.0
    %1620 = vmatpush1.msra.mxu0 0.0
    %1621 = vmatprep.subr.mxu0 0.0
    %1622 = vmatpush1.msra.mxu0 0.0
    %1623 = vmatprep.subr.mxu0 0.0
    %1624 = vmatpush1.msra.mxu0 0.0
    %1625 = vmatprep.subr.mxu0 0.0
    %1626 = vmatpush1.msra.mxu0 0.0
    %1627 = vmatprep.subr.mxu0 0.0
    %1628 = vmatpush1.msra.mxu0 0.0
    %1629 = vmatprep.subr.mxu0 0.0
    %1630 = vmatpush1.msra.mxu0 0.0
    %1631 = vmatprep.subr.mxu0 0.0
    %1632 = vmatpush1.msra.mxu0 0.0
    %1633 = vmatprep.subr.mxu0 0.0
    %1634 = vmatpush1.msra.mxu0 0.0
    %1635 = vmatprep.subr.mxu0 0.0
    %1636 = vmatpush1.msra.mxu0 0.0
    %1637 = vmatprep.subr.mxu0 0.0
    %1638 = vmatpush1.msra.mxu0 0.0
    %1639 = vmatprep.subr.mxu0 0.0
    %1640 = vmatpush1.msra.mxu0 0.0
    %1641 = vmatprep.subr.mxu0 0.0
    %1642 = vmatpush1.msra.mxu0 0.0
    %1643 = vmatprep.subr.mxu0 0.0
    %1644 = vmatpush1.msra.mxu0 0.0
    %1645 = vmatprep.subr.mxu0 0.0
    %1646 = vmatpush1.msra.mxu0 0.0
    %1647 = vmatprep.mubr.f32.mxu0 0.0
    %1648 = vmatmul.mubr.f32.gmra.mrb[0].mxu0 %v1581
    %v1649 = vpop.f32.mrb[0].mxu0
    %v1650 = vadd.f32 0.0, %v1649
    %v1651 = vpop.f32.mrb[0].mxu0
    %1652 = vdwg.mxu0
    %v1653 = vadd.f32 %v1577, %v1650
    %v1654 = vxor.u32 %v1653, 2147483648
    %v1655 = vmul.f32 %v1654, 1.442695
    %v1656 = vpow.pop %v1655
    %v1657 = vadd.f32 %v1656, 1.0
    %v1658 = vrcp.pop %v1657
    %v1659 = vmul.f32 1.0, %v1658
    %v1660 = vtanh.pop %v1653
    %v1661 = vmul.f32 %v1659, %v1570
    %1663 = vrot.lane.b32.xlu0 %v1660, 64
    %v1664 = vpop.permute.xlu0 %1663
    %v1666 = vmul.f32 %v1659, %v1664
    %1668 = vrot.lane.b32.xlu0 %v1666, 32
    %v1669 = vpop.permute.xlu0 %1668
    %v1671 = vadd.f32 %v1661, %v1669
    %v1672 = vtanh.pop %v1671
    %1674 = vrot.lane.b32.xlu0 %v1672, 64
    %v1675 = vpop.permute.xlu0 %1674
    %v1677 = vmul.f32 %v1659, %v1675
    %v1678 = vld [vmem:[#allocation2 + $0x28] sm:$0xff]
    %1680 = vrot.lane.b32.xlu0 %v1677, 32
    %v1681 = vpop.permute.xlu0 %1680
    %v1682 = vsel %vm193, %v1681, 0
    %1684 = vmatprep.subr.mxu0 0.0
    %1685 = vmatpush1.msra.mxu0 %v1174
    %1686 = vmatprep.subr.mxu0 0.0
    %1687 = vmatpush1.msra.mxu0 %v1175
    %1688 = vmatprep.subr.mxu0 0.0
    %1689 = vmatpush1.msra.mxu0 %v1176
    %1690 = vmatprep.subr.mxu0 0.0
    %1691 = vmatpush1.msra.mxu0 %v1177
    %1692 = vmatprep.subr.mxu0 0.0
    %1693 = vmatpush1.msra.mxu0 0.0
    %1694 = vmatprep.subr.mxu0 0.0
    %1695 = vmatpush1.msra.mxu0 0.0
    %1696 = vmatprep.subr.mxu0 0.0
    %1697 = vmatpush1.msra.mxu0 0.0
    %1698 = vmatprep.subr.mxu0 0.0
    %1699 = vmatpush1.msra.mxu0 0.0
    %1700 = vmatprep.subr.mxu0 0.0
    %1701 = vmatpush1.msra.mxu0 0.0
    %1702 = vmatprep.subr.mxu0 0.0
    %1703 = vmatpush1.msra.mxu0 0.0
    %1704 = vmatprep.subr.mxu0 0.0
    %1705 = vmatpush1.msra.mxu0 0.0
    %1706 = vmatprep.subr.mxu0 0.0
    %1707 = vmatpush1.msra.mxu0 0.0
    %1708 = vmatprep.subr.mxu0 0.0
    %1709 = vmatpush1.msra.mxu0 0.0
    %1710 = vmatprep.subr.mxu0 0.0
    %1711 = vmatpush1.msra.mxu0 0.0
    %1712 = vmatprep.subr.mxu0 0.0
    %1713 = vmatpush1.msra.mxu0 0.0
    %1714 = vmatprep.subr.mxu0 0.0
    %1715 = vmatpush1.msra.mxu0 0.0
    %1716 = vmatprep.subr.mxu0 0.0
    %1717 = vmatpush1.msra.mxu0 0.0
    %1718 = vmatprep.subr.mxu0 0.0
    %1719 = vmatpush1.msra.mxu0 0.0
    %1720 = vmatprep.subr.mxu0 0.0
    %1721 = vmatpush1.msra.mxu0 0.0
    %1722 = vmatprep.subr.mxu0 0.0
    %1723 = vmatpush1.msra.mxu0 0.0
    %1724 = vmatprep.subr.mxu0 0.0
    %1725 = vmatpush1.msra.mxu0 0.0
    %1726 = vmatprep.subr.mxu0 0.0
    %1727 = vmatpush1.msra.mxu0 0.0
    %1728 = vmatprep.subr.mxu0 0.0
    %1729 = vmatpush1.msra.mxu0 0.0
    %1730 = vmatprep.subr.mxu0 0.0
    %1731 = vmatpush1.msra.mxu0 0.0
    %1732 = vmatprep.subr.mxu0 0.0
    %1733 = vmatpush1.msra.mxu0 0.0
    %1734 = vmatprep.subr.mxu0 0.0
    %1735 = vmatpush1.msra.mxu0 0.0
    %1736 = vmatprep.subr.mxu0 0.0
    %1737 = vmatpush1.msra.mxu0 0.0
    %1738 = vmatprep.subr.mxu0 0.0
    %1739 = vmatpush1.msra.mxu0 0.0
    %1740 = vmatprep.subr.mxu0 0.0
    %1741 = vmatpush1.msra.mxu0 0.0
    %1742 = vmatprep.subr.mxu0 0.0
    %1743 = vmatpush1.msra.mxu0 0.0
    %1744 = vmatprep.subr.mxu0 0.0
    %1745 = vmatpush1.msra.mxu0 0.0
    %1746 = vmatprep.subr.mxu0 0.0
    %1747 = vmatpush1.msra.mxu0 0.0
    %1748 = vmatprep.mubr.f32.mxu0 0.0
    %1749 = vmatmul.mubr.f32.gmra.mrb[0].mxu0 %v1682
    %v1750 = vpop.f32.mrb[0].mxu0
    %v1751 = vadd.f32 0.0, %v1750
    %v1752 = vpop.f32.mrb[0].mxu0
    %1753 = vdwg.mxu0
    %v1754 = vadd.f32 %v1678, %v1751
    %v1755 = vxor.u32 %v1754, 2147483648
    %v1756 = vmul.f32 %v1755, 1.442695
    %v1757 = vpow.pop %v1756
    %v1758 = vadd.f32 %v1757, 1.0
    %v1759 = vrcp.pop %v1758
    %v1760 = vmul.f32 1.0, %v1759
    %v1761 = vtanh.pop %v1754
    %v1762 = vmul.f32 %v1760, %v1671
    %1764 = vrot.lane.b32.xlu0 %v1761, 64
    %v1765 = vpop.permute.xlu0 %1764
    %v1767 = vmul.f32 %v1760, %v1765
    %1769 = vrot.lane.b32.xlu0 %v1767, 32
    %v1770 = vpop.permute.xlu0 %1769
    %v1772 = vadd.f32 %v1762, %v1770
    %v1773 = vtanh.pop %v1772
    %1775 = vrot.lane.b32.xlu0 %v1773, 64
    %v1776 = vpop.permute.xlu0 %1775
    %v1778 = vmul.f32 %v1760, %v1776
    %v1779 = vld [vmem:[#allocation2 + $0x30] sm:$0xff]
    %1781 = vrot.lane.b32.xlu0 %v1778, 32
    %v1782 = vpop.permute.xlu0 %1781
    %v1783 = vsel %vm193, %v1782, 0
    %1785 = vmatprep.subr.mxu0 0.0
    %1786 = vmatpush1.msra.mxu0 %v1174
    %1787 = vmatprep.subr.mxu0 0.0
    %1788 = vmatpush1.msra.mxu0 %v1175
    %1789 = vmatprep.subr.mxu0 0.0
    %1790 = vmatpush1.msra.mxu0 %v1176
    %1791 = vmatprep.subr.mxu0 0.0
    %1792 = vmatpush1.msra.mxu0 %v1177
    %1793 = vmatprep.subr.mxu0 0.0
    %1794 = vmatpush1.msra.mxu0 0.0
    %1795 = vmatprep.subr.mxu0 0.0
    %1796 = vmatpush1.msra.mxu0 0.0
    %1797 = vmatprep.subr.mxu0 0.0
    %1798 = vmatpush1.msra.mxu0 0.0
    %1799 = vmatprep.subr.mxu0 0.0
    %1800 = vmatpush1.msra.mxu0 0.0
    %1801 = vmatprep.subr.mxu0 0.0
    %1802 = vmatpush1.msra.mxu0 0.0
    %1803 = vmatprep.subr.mxu0 0.0
    %1804 = vmatpush1.msra.mxu0 0.0
    %1805 = vmatprep.subr.mxu0 0.0
    %1806 = vmatpush1.msra.mxu0 0.0
    %1807 = vmatprep.subr.mxu0 0.0
    %1808 = vmatpush1.msra.mxu0 0.0
    %1809 = vmatprep.subr.mxu0 0.0
    %1810 = vmatpush1.msra.mxu0 0.0
    %1811 = vmatprep.subr.mxu0 0.0
    %1812 = vmatpush1.msra.mxu0 0.0
    %1813 = vmatprep.subr.mxu0 0.0
    %1814 = vmatpush1.msra.mxu0 0.0
    %1815 = vmatprep.subr.mxu0 0.0
    %1816 = vmatpush1.msra.mxu0 0.0
    %1817 = vmatprep.subr.mxu0 0.0
    %1818 = vmatpush1.msra.mxu0 0.0
    %1819 = vmatprep.subr.mxu0 0.0
    %1820 = vmatpush1.msra.mxu0 0.0
    %1821 = vmatprep.subr.mxu0 0.0
    %1822 = vmatpush1.msra.mxu0 0.0
    %1823 = vmatprep.subr.mxu0 0.0
    %1824 = vmatpush1.msra.mxu0 0.0
    %1825 = vmatprep.subr.mxu0 0.0
    %1826 = vmatpush1.msra.mxu0 0.0
    %1827 = vmatprep.subr.mxu0 0.0
    %1828 = vmatpush1.msra.mxu0 0.0
    %1829 = vmatprep.subr.mxu0 0.0
    %1830 = vmatpush1.msra.mxu0 0.0
    %1831 = vmatprep.subr.mxu0 0.0
    %1832 = vmatpush1.msra.mxu0 0.0
    %1833 = vmatprep.subr.mxu0 0.0
    %1834 = vmatpush1.msra.mxu0 0.0
    %1835 = vmatprep.subr.mxu0 0.0
    %1836 = vmatpush1.msra.mxu0 0.0
    %1837 = vmatprep.subr.mxu0 0.0
    %1838 = vmatpush1.msra.mxu0 0.0
    %1839 = vmatprep.subr.mxu0 0.0
    %1840 = vmatpush1.msra.mxu0 0.0
    %1841 = vmatprep.subr.mxu0 0.0
    %1842 = vmatpush1.msra.mxu0 0.0
    %1843 = vmatprep.subr.mxu0 0.0
    %1844 = vmatpush1.msra.mxu0 0.0
    %1845 = vmatprep.subr.mxu0 0.0
    %1846 = vmatpush1.msra.mxu0 0.0
    %1847 = vmatprep.subr.mxu0 0.0
    %1848 = vmatpush1.msra.mxu0 0.0
    %1849 = vmatprep.mubr.f32.mxu0 0.0
    %1850 = vmatmul.mubr.f32.gmra.mrb[0].mxu0 %v1783
    %v1851 = vpop.f32.mrb[0].mxu0
    %v1852 = vadd.f32 0.0, %v1851
    %v1853 = vpop.f32.mrb[0].mxu0
    %1854 = vdwg.mxu0
    %v1855 = vadd.f32 %v1779, %v1852
    %v1856 = vxor.u32 %v1855, 2147483648
    %v1857 = vmul.f32 %v1856, 1.442695
    %v1858 = vpow.pop %v1857
    %v1859 = vadd.f32 %v1858, 1.0
    %v1860 = vrcp.pop %v1859
    %v1861 = vmul.f32 1.0, %v1860
    %v1862 = vtanh.pop %v1855
    %v1863 = vmul.f32 %v1861, %v1772
    %1865 = vrot.lane.b32.xlu0 %v1862, 64
    %v1866 = vpop.permute.xlu0 %1865
    %v1868 = vmul.f32 %v1861, %v1866
    %1870 = vrot.lane.b32.xlu0 %v1868, 32
    %v1871 = vpop.permute.xlu0 %1870
    %v1873 = vadd.f32 %v1863, %v1871
    %v1874 = vtanh.pop %v1873
    %1876 = vrot.lane.b32.xlu0 %v1874, 64
    %v1877 = vpop.permute.xlu0 %1876
    %v1879 = vmul.f32 %v1861, %v1877
    %v1880 = vld [vmem:[#allocation2 + $0x38] sm:$0xff]
    %1882 = vrot.lane.b32.xlu0 %v1879, 32
    %v1883 = vpop.permute.xlu0 %1882
    %v1884 = vsel %vm193, %v1883, 0
    %1886 = vmatprep.subr.mxu0 0.0
    %1887 = vmatpush1.msra.mxu0 %v1174
    %1888 = vmatprep.subr.mxu0 0.0
    %1889 = vmatpush1.msra.mxu0 %v1175
    %1890 = vmatprep.subr.mxu0 0.0
    %1891 = vmatpush1.msra.mxu0 %v1176
    %1892 = vmatprep.subr.mxu0 0.0
    %1893 = vmatpush1.msra.mxu0 %v1177
    %1894 = vmatprep.subr.mxu0 0.0
    %1895 = vmatpush1.msra.mxu0 0.0
    %1896 = vmatprep.subr.mxu0 0.0
    %1897 = vmatpush1.msra.mxu0 0.0
    %1898 = vmatprep.subr.mxu0 0.0
    %1899 = vmatpush1.msra.mxu0 0.0
    %1900 = vmatprep.subr.mxu0 0.0
    %1901 = vmatpush1.msra.mxu0 0.0
    %1902 = vmatprep.subr.mxu0 0.0
    %1903 = vmatpush1.msra.mxu0 0.0
    %1904 = vmatprep.subr.mxu0 0.0
    %1905 = vmatpush1.msra.mxu0 0.0
    %1906 = vmatprep.subr.mxu0 0.0
    %1907 = vmatpush1.msra.mxu0 0.0
    %1908 = vmatprep.subr.mxu0 0.0
    %1909 = vmatpush1.msra.mxu0 0.0
    %1910 = vmatprep.subr.mxu0 0.0
    %1911 = vmatpush1.msra.mxu0 0.0
    %1912 = vmatprep.subr.mxu0 0.0
    %1913 = vmatpush1.msra.mxu0 0.0
    %1914 = vmatprep.subr.mxu0 0.0
    %1915 = vmatpush1.msra.mxu0 0.0
    %1916 = vmatprep.subr.mxu0 0.0
    %1917 = vmatpush1.msra.mxu0 0.0
    %1918 = vmatprep.subr.mxu0 0.0
    %1919 = vmatpush1.msra.mxu0 0.0
    %1920 = vmatprep.subr.mxu0 0.0
    %1921 = vmatpush1.msra.mxu0 0.0
    %1922 = vmatprep.subr.mxu0 0.0
    %1923 = vmatpush1.msra.mxu0 0.0
    %1924 = vmatprep.subr.mxu0 0.0
    %1925 = vmatpush1.msra.mxu0 0.0
    %1926 = vmatprep.subr.mxu0 0.0
    %1927 = vmatpush1.msra.mxu0 0.0
    %1928 = vmatprep.subr.mxu0 0.0
    %1929 = vmatpush1.msra.mxu0 0.0
    %1930 = vmatprep.subr.mxu0 0.0
    %1931 = vmatpush1.msra.mxu0 0.0
    %1932 = vmatprep.subr.mxu0 0.0
    %1933 = vmatpush1.msra.mxu0 0.0
    %1934 = vmatprep.subr.mxu0 0.0
    %1935 = vmatpush1.msra.mxu0 0.0
    %1936 = vmatprep.subr.mxu0 0.0
    %1937 = vmatpush1.msra.mxu0 0.0
    %1938 = vmatprep.subr.mxu0 0.0
    %1939 = vmatpush1.msra.mxu0 0.0
    %1940 = vmatprep.subr.mxu0 0.0
    %1941 = vmatpush1.msra.mxu0 0.0
    %1942 = vmatprep.subr.mxu0 0.0
    %1943 = vmatpush1.msra.mxu0 0.0
    %1944 = vmatprep.subr.mxu0 0.0
    %1945 = vmatpush1.msra.mxu0 0.0
    %1946 = vmatprep.subr.mxu0 0.0
    %1947 = vmatpush1.msra.mxu0 0.0
    %1948 = vmatprep.subr.mxu0 0.0
    %1949 = vmatpush1.msra.mxu0 0.0
    %1950 = vmatprep.mubr.f32.mxu0 0.0
    %1951 = vmatmul.mubr.f32.gmra.mrb[0].mxu0 %v1884
    %v1952 = vpop.f32.mrb[0].mxu0
    %v1953 = vadd.f32 0.0, %v1952
    %v1954 = vpop.f32.mrb[0].mxu0
    %1955 = vdwg.mxu0
    %v1956 = vadd.f32 %v1880, %v1953
    %v1957 = vxor.u32 %v1956, 2147483648
    %v1958 = vmul.f32 %v1957, 1.442695
    %v1959 = vpow.pop %v1958
    %v1960 = vadd.f32 %v1959, 1.0
    %v1961 = vrcp.pop %v1960
    %v1962 = vmul.f32 1.0, %v1961
    %v1963 = vtanh.pop %v1956
    %v1964 = vmul.f32 %v1962, %v1873
    %1966 = vrot.lane.b32.xlu0 %v1963, 64
    %v1967 = vpop.permute.xlu0 %1966
    %v1969 = vmul.f32 %v1962, %v1967
    %1971 = vrot.lane.b32.xlu0 %v1969, 32
    %v1972 = vpop.permute.xlu0 %1971
    %v1974 = vadd.f32 %v1964, %v1972
    %v1975 = vtanh.pop %v1974
    %1977 = vrot.lane.b32.xlu0 %v1975, 64
    %v1978 = vpop.permute.xlu0 %1977
    %v1980 = vmul.f32 %v1962, %v1978
    %v1981 = vld [vmem:[%s7] sm:$0xff]
    %v1982 = vld [vmem:[%s7 + $0x8] sm:$0xff]
    %v1983 = vld [vmem:[%s7 + $0x10] sm:$0xff]
    %v1984 = vld [vmem:[%s7 + $0x18] sm:$0xff]
    %v1985 = vld [vmem:[%s8] sm:$0x1]
    %v1987 = vlaneseq
    %v1988 = vshrl.u32 %v1987, 7
    %v1989 = vsub.s32 0, %v1988
    %v1990 = vrot.slane %v1985, %v1989
    %1993 = vrot.lane.b32.xlu0 %v1980, 32
    %v1994 = vpop.permute.xlu0 %1993
    %v1995 = vsel %vm193, %v1994, 0
    %1997 = vmatprep.subr.mxu0 0.0
    %1998 = vmatpush1.msra.mxu0 %v1981
    %1999 = vmatprep.subr.mxu0 0.0
    %2000 = vmatpush1.msra.mxu0 %v1982
    %2001 = vmatprep.subr.mxu0 0.0
    %2002 = vmatpush1.msra.mxu0 %v1983
    %2003 = vmatprep.subr.mxu0 0.0
    %2004 = vmatpush1.msra.mxu0 %v1984
    %2005 = vmatprep.subr.mxu0 0.0
    %2006 = vmatpush1.msra.mxu0 0.0
    %2007 = vmatprep.subr.mxu0 0.0
    %2008 = vmatpush1.msra.mxu0 0.0
    %2009 = vmatprep.subr.mxu0 0.0
    %2010 = vmatpush1.msra.mxu0 0.0
    %2011 = vmatprep.subr.mxu0 0.0
    %2012 = vmatpush1.msra.mxu0 0.0
    %2013 = vmatprep.subr.mxu0 0.0
    %2014 = vmatpush1.msra.mxu0 0.0
    %2015 = vmatprep.subr.mxu0 0.0
    %2016 = vmatpush1.msra.mxu0 0.0
    %2017 = vmatprep.subr.mxu0 0.0
    %2018 = vmatpush1.msra.mxu0 0.0
    %2019 = vmatprep.subr.mxu0 0.0
    %2020 = vmatpush1.msra.mxu0 0.0
    %2021 = vmatprep.subr.mxu0 0.0
    %2022 = vmatpush1.msra.mxu0 0.0
    %2023 = vmatprep.subr.mxu0 0.0
    %2024 = vmatpush1.msra.mxu0 0.0
    %2025 = vmatprep.subr.mxu0 0.0
    %2026 = vmatpush1.msra.mxu0 0.0
    %2027 = vmatprep.subr.mxu0 0.0
    %2028 = vmatpush1.msra.mxu0 0.0
    %2029 = vmatprep.subr.mxu0 0.0
    %2030 = vmatpush1.msra.mxu0 0.0
    %2031 = vmatprep.subr.mxu0 0.0
    %2032 = vmatpush1.msra.mxu0 0.0
    %2033 = vmatprep.subr.mxu0 0.0
    %2034 = vmatpush1.msra.mxu0 0.0
    %2035 = vmatprep.subr.mxu0 0.0
    %2036 = vmatpush1.msra.mxu0 0.0
    %2037 = vmatprep.subr.mxu0 0.0
    %2038 = vmatpush1.msra.mxu0 0.0
    %2039 = vmatprep.subr.mxu0 0.0
    %2040 = vmatpush1.msra.mxu0 0.0
    %2041 = vmatprep.subr.mxu0 0.0
    %2042 = vmatpush1.msra.mxu0 0.0
    %2043 = vmatprep.subr.mxu0 0.0
    %2044 = vmatpush1.msra.mxu0 0.0
    %2045 = vmatprep.subr.mxu0 0.0
    %2046 = vmatpush1.msra.mxu0 0.0
    %2047 = vmatprep.subr.mxu0 0.0
    %2048 = vmatpush1.msra.mxu0 0.0
    %2049 = vmatprep.subr.mxu0 0.0
    %2050 = vmatpush1.msra.mxu0 0.0
    %2051 = vmatprep.subr.mxu0 0.0
    %2052 = vmatpush1.msra.mxu0 0.0
    %2053 = vmatprep.subr.mxu0 0.0
    %2054 = vmatpush1.msra.mxu0 0.0
    %2055 = vmatprep.subr.mxu0 0.0
    %2056 = vmatpush1.msra.mxu0 0.0
    %2057 = vmatprep.subr.mxu0 0.0
    %2058 = vmatpush1.msra.mxu0 0.0
    %2059 = vmatprep.subr.mxu0 0.0
    %2060 = vmatpush1.msra.mxu0 0.0
    %2061 = vmatprep.mubr.f32.mxu0 0.0
    %2062 = vmatmul.mubr.f32.gmra.mrb[0].mxu0 %v1995
    %v2063 = vpop.f32.mrb[0].mxu0
    %v2064 = vadd.f32 %v1990, %v2063
    %v2065 = vpop.f32.mrb[0].mxu0
    %2066 = vdwg.mxu0
    %vm2067 = vcmask 64512
    %2068 = vst.msk [vmem:[#allocation4] sm:$0xff] %vm2067, %v2064
    // Predicated region
    $region38: #{tpu_custom_call.1} parent=1 // pred_check
      _
    $region39: #{tpu_custom_call.1} parent=1 // pred_check_branch
      %2070 = sbr.rel (0) target = $region41
    $region40: #{tpu_custom_call.1} parent=1 // pred_region
      %s2072 = ssub.s32 128, 128
      %2073 = vsyncadd [#allocation5], %s2072
      %s2075 = sshll.u32 [#allocation4], 4
      %s2076 = int_to_ptr.vmem [resolvable:$true] %s2075
      %2078 = dma.vmem_to_hbm [thread:$0]  %s2076, 128, %s9, [#allocation5]
    $region41: #{tpu_custom_call.1} parent=1 // pred_fallthru
      _
    // Predicated region
    $region42: #{tpu_custom_call.1} parent=1 // pred_check
      _
    $region43: #{tpu_custom_call.1} parent=1 // pred_check_branch
      %2080 = sbr.rel (0) target = $region45
    $region44: #{tpu_custom_call.1} parent=1 // pred_region
      %2081 = dma.done [#allocation5], 128
    $region45: #{tpu_custom_call.1} parent=1 // pred_fallthru
      _
    %2082 = vsyncpa [#allocation5], 1

</llo_original>
